<compile_context>
chip_gen: v6e
topology: v6e:2x2x1
jax: 0.10.0
libtpu: 0.0.40
codegen_flags: <defaults>
</compile_context>

<pallas_src>
import jax
import jax.numpy as jnp
from jax.experimental import pallas as pl
from jax.experimental.pallas import tpu as pltpu

LN_EPS = 1e-5  # torch.nn.LayerNorm default


def _round_up(x, m):
    return ((x + m - 1) // m) * m


def _layernorm_silu(x, gamma, beta):
    """LayerNorm over last dim (biased var, eps=1e-5) followed by SiLU."""
    mu = jnp.mean(x, axis=-1, keepdims=True)
    var = jnp.mean((x - mu) ** 2, axis=-1, keepdims=True)
    xn = (x - mu) * jax.lax.rsqrt(var + LN_EPS)
    y = xn * gamma + beta
    return y * jax.nn.sigmoid(y)  # SiLU


def edge_tile_kernel(node_lin_ref,   # (N_pad, 3D) resident: [src_gate | dst_update | dst_gate]
                     edge_ref,       # (TE, D)     edge-feature tile
                     idx_ref,        # (TE, 2)     int32 [src | dst] per edge (-1 for padding)
                     w_eg_ref,       # (D, D)      edge_gate weight
                     b_eg_ref,       # (1, D)      edge_gate bias
                     ge_ref, be_ref, # (1, D)      bn_edges LayerNorm gamma / beta
                     agg_ref,        # (1, N_pad, 2D) per-core partial [sum_sigma_h | sum_sigma]
                     y_ref):         # (TE, D)     edge output tile
    f32 = jnp.float32
    j = pl.program_id(1)             # edge-tile step within this core (reduction axis)
    TE, D = edge_ref.shape
    Npad = node_lin_ref.shape[0]

    @pl.when(j == 0)
    def _init():
        agg_ref[...] = jnp.zeros_like(agg_ref)

    # Per-tile incidence one-hots built on the VPU from packed int32 indices.
    idx = idx_ref[...]
    lane_n = jax.lax.broadcasted_iota(jnp.int32, (TE, Npad), 1)
    src_oh = (lane_n == idx[:, 0:1]).astype(f32)   # (TE, N_pad)
    dst_oh = (lane_n == idx[:, 1:2]).astype(f32)   # (TE, N_pad); all-zero row for pad edges

    e = edge_ref[...]

    # Gather [e_src | Bh] for edge sources in ONE MXU call, e_dst for destinations.
    src_gath = jnp.dot(src_oh, node_lin_ref[:, 0:2 * D], preferred_element_type=f32)
    e_src = src_gath[:, 0:D]
    bh = src_gath[:, D:2 * D]
    e_dst = jnp.dot(dst_oh, node_lin_ref[:, 2 * D:3 * D], preferred_element_type=f32)

    # m_e = e_src[src_e] + e_dst[dst_e] + edge_gate(edge_feats_e)
    m = (e_src + e_dst
         + jnp.dot(e, w_eg_ref[...], preferred_element_type=f32) + b_eg_ref[...])
    sigma = jax.nn.sigmoid(m)

    # Merged scatter: dst_oh^T @ [Bh*sigma | sigma], contraction over the edge-tile dim.
    msg = jnp.concatenate([bh * sigma, sigma], axis=-1)            # (TE, 2D)
    scat = jax.lax.dot_general(dst_oh, msg,
                               dimension_numbers=(((0,), (0,)), ((), ())),
                               preferred_element_type=f32)          # (N_pad, 2D)
    agg_ref[...] += scat[None]

    # Edge output for this tile: LN + SiLU + residual.
    y = _layernorm_silu(m, ge_ref[...], be_ref[...])
    y_ref[...] = e + y


def node_finalize_kernel(node_ref,   # (tile_n, D)
                         agg_ref,    # (C, tile_n, 2D) per-core partial aggregates
                         w_su_ref,   # (D, D) src_update weight
                         b_su_ref,   # (1, D) src_update bias
                         gn_ref, bn_ref,   # bn_nodes LayerNorm gamma / beta
                         x_ref):     # (tile_n, D) node output
    f32 = jnp.float32
    D = node_ref.shape[1]
    agg = jnp.sum(agg_ref[...], axis=0)          # reduce per-core partials
    sum_sigma_h = agg[:, 0:D]
    sum_sigma = agg[:, D:2 * D]
    h_agg = sum_sigma_h / (sum_sigma + 1e-6)     # exact divide, matches the reference
    x = (jnp.dot(node_ref[...], w_su_ref[...], preferred_element_type=f32)
         + b_su_ref[...] + h_agg)
    x = _layernorm_silu(x, gn_ref[...], bn_ref[...])
    x_ref[...] = node_ref[...] + x


def edge_gated_graph_conv(node_feats, edge_feats, src_idx, dst_idx, params, *,
                          tile_e=None, num_cores=2):
    """node_feats: (N, D), edge_feats: (E, D), edge e goes src_idx[e] -> dst_idx[e]."""
    N, D = node_feats.shape
    E = edge_feats.shape[0]
    C = num_cores

    # Padding: N to a lane-aligned multiple of 128; E to a multiple of C * tile_e.
    N_pad = _round_up(N, 128)
    if tile_e is None:
        tile_e = min(512, _round_up(max(E // C, 1), 128))
    E_pad = _round_up(max(E, 1), C * tile_e)
    J = E_pad // (C * tile_e)                    # edge tiles per core

    node_p = jnp.pad(node_feats, ((0, N_pad - N), (0, 0)))
    edge_p = jnp.pad(edge_feats, ((0, E_pad - E), (0, 0)))
    idx = jnp.stack([src_idx.astype(jnp.int32), dst_idx.astype(jnp.int32)], axis=1)
    idx_p = jnp.pad(idx, ((0, E_pad - E), (0, 0)), constant_values=-1)  # -1 => inert edge

    # Hoisted fused node linear (full f32): [src_gate | dst_update | dst_gate].
    w_node = jnp.concatenate([params["w_sg"], params["w_du"], params["w_dg"]], axis=1)
    b_node = jnp.concatenate([params["b_sg"], params["b_du"], params["b_dg"]], axis=1)
    node_lin = jnp.dot(node_p, w_node, precision=jax.lax.Precision.HIGHEST,
                       preferred_element_type=jnp.float32) + b_node     # (N_pad, 3D)

    # VMEM budget: rough estimate with headroom, clamped to the chip's capacity.
    est = 4 * (2 * (N_pad * 3 * D + D * D + 4 * D)       # resident inputs (double-buffered)
               + 2 * (tile_e * D + tile_e * 128)         # edge + (lane-padded) idx tiles
               + 2 * (N_pad * 2 * D + tile_e * D)        # output buffers
               + 3 * tile_e * N_pad + 6 * tile_e * D)    # in-body temporaries
    try:
        vmem_cap = int(pltpu.get_tpu_info().vmem_capacity_bytes)
    except Exception:
        vmem_cap = 64 * 1024 * 1024
    vmem_limit = int(min(int(0.9 * vmem_cap), max(32 * 1024 * 1024, 2 * est)))

    # --- edge-tile kernel: grid (cores, edge tiles per core) ---
    def fixed(shape):
        return pl.BlockSpec(shape, lambda c, j: (0, 0))

    in_specs = [
        fixed((N_pad, 3 * D)),                                    # node_lin (resident)
        pl.BlockSpec((tile_e, D), lambda c, j: (c * J + j, 0)),   # edge-feature tile
        pl.BlockSpec((tile_e, 2), lambda c, j: (c * J + j, 0)),   # packed [src|dst] indices
        fixed((D, D)), fixed((1, D)),                             # edge_gate weight / bias
        fixed((1, D)), fixed((1, D)),                             # bn_edges gamma / beta
    ]
    out_specs = (
        pl.BlockSpec((1, N_pad, 2 * D), lambda c, j: (c, 0, 0)),  # per-core partial agg
        pl.BlockSpec((tile_e, D), lambda c, j: (c * J + j, 0)),   # edge output tile
    )
    out_shapes = (
        jax.ShapeDtypeStruct((C, N_pad, 2 * D), jnp.float32),
        jax.ShapeDtypeStruct((E_pad, D), jnp.float32),
    )

    agg, y_pad = pl.pallas_call(
        edge_tile_kernel,
        out_shape=out_shapes,
        grid_spec=pltpu.PrefetchScalarGridSpec(
            num_scalar_prefetch=0,
            grid=(C, J),
            in_specs=in_specs,
            out_specs=out_specs,
        ),
        compiler_params=pltpu.CompilerParams(
            dimension_semantics=("parallel", "arbitrary"),  # cores x edge reduction
            vmem_limit_bytes=vmem_limit,
        ),
    )(node_lin, edge_p, idx_p, params["w_eg"], params["b_eg"],
      params["gamma_e"], params["beta_e"])

    # --- node-finalize kernel: reduce partials, src_update + LN + SiLU + residual ---
    tile_n = max(t for t in (1024, 512, 256, 128) if N_pad % t == 0)

    def nfixed(shape):
        return pl.BlockSpec(shape, lambda i: (0, 0))

    x_pad = pl.pallas_call(
        node_finalize_kernel,
        out_shape=jax.ShapeDtypeStruct((N_pad, D), jnp.float32),
        grid_spec=pltpu.PrefetchScalarGridSpec(
            num_scalar_prefetch=0,
            grid=(N_pad // tile_n,),
            in_specs=[
                pl.BlockSpec((tile_n, D), lambda i: (i, 0)),
                pl.BlockSpec((C, tile_n, 2 * D), lambda i: (0, i, 0)),
                nfixed((D, D)), nfixed((1, D)),
                nfixed((1, D)), nfixed((1, D)),
            ],
            out_specs=pl.BlockSpec((tile_n, D), lambda i: (i, 0)),
        ),
        compiler_params=pltpu.CompilerParams(
            dimension_semantics=("parallel",),
            vmem_limit_bytes=vmem_limit,
        ),
    )(node_p, agg, params["w_su"], params["b_su"], params["gamma_n"], params["beta_n"])

    return x_pad[:N], y_pad[:E]


def _reference(node_feats, edge_feats, src_idx, dst_idx, params):
    """Pure-JAX reference mirroring the PyTorch / DGL forward."""
    lin = lambda x, w, b: x @ w + b
    e_src = lin(node_feats, params["w_sg"], params["b_sg"])
    e_dst = lin(node_feats, params["w_dg"], params["b_dg"])
    m = e_src[src_idx] + e_dst[dst_idx] + lin(edge_feats, params["w_eg"], params["b_eg"])
    sigma = jax.nn.sigmoid(m)
    Bh = lin(node_feats, params["w_du"], params["b_du"])
    N = node_feats.shape[0]
    sum_sigma_h = jax.ops.segment_sum(Bh[src_idx] * sigma, dst_idx, num_segments=N)
    sum_sigma = jax.ops.segment_sum(sigma, dst_idx, num_segments=N)
    h_agg = sum_sigma_h / (sum_sigma + 1e-6)
    x = lin(node_feats, params["w_su"], params["b_su"]) + h_agg
    x = _layernorm_silu(x, params["gamma_n"], params["beta_n"])
    y = _layernorm_silu(m, params["gamma_e"], params["beta_e"])
    return node_feats + x, edge_feats + y


def _init_params(key, d):
    ks = jax.random.split(key, 10)
    p = {}
    names = ["sg", "dg", "eg", "du", "su"]
    for i, n in enumerate(names):
        # nn.Linear(d, d): weight (out, in) -> pass transposed (in, out); bias (d,) -> (1, d)
        p[f"w_{n}"] = 0.1 * jax.random.normal(ks[2 * i], (d, d), jnp.float32)
        p[f"b_{n}"] = 0.1 * jax.random.normal(ks[2 * i + 1], (1, d), jnp.float32)
    # LayerNorm affine params (non-default values to exercise them).
    p["gamma_n"] = jnp.full((1, d), 1.05, jnp.float32)
    p["beta_n"] = jnp.full((1, d), -0.02, jnp.float32)
    p["gamma_e"] = jnp.full((1, d), 0.95, jnp.float32)
    p["beta_e"] = jnp.full((1, d), 0.03, jnp.float32)
    return p


if __name__ == "__main__":
    N, E, D = 64, 256, 128  # nodes, edges, feature dim (input == output for residual)

    key = jax.random.PRNGKey(0)
    k_node, k_edge, k_src, k_dst, k_par = jax.random.split(key, 5)

    node_feats = jax.random.normal(k_node, (N, D), jnp.float32)
    edge_feats = jax.random.normal(k_edge, (E, D), jnp.float32)
    src_idx = jax.random.randint(k_src, (E,), 0, N)
    dst_idx = jax.random.randint(k_dst, (E,), 0, N)
    params = _init_params(k_par, D)

    x_out, y_out = edge_gated_graph_conv(node_feats, edge_feats, src_idx, dst_idx, params)
    jax.block_until_ready((x_out, y_out))

    x_ref, y_ref = _reference(node_feats, edge_feats, src_idx, dst_idx, params)
    assert jnp.allclose(x_out, x_ref, atol=1e-4, rtol=1e-4), "node output mismatch"
    assert jnp.allclose(y_out, y_ref, atol=1e-4, rtol=1e-4), "edge output mismatch"

    print("KERNEL_OK")
</pallas_src>

<mosaic_0001>
module attributes {stable_mosaic.version = 11 : i64} {
  func.func @edge_tile_kernel(%arg0: i32, %arg1: i32, %arg2: memref<128x384xf32, #tpu.memory_space<vmem>>, %arg3: memref<128x128xf32, #tpu.memory_space<vmem>>, %arg4: memref<128x2xi32, #tpu.memory_space<vmem>>, %arg5: memref<128x128xf32, #tpu.memory_space<vmem>>, %arg6: memref<1x128xf32, #tpu.memory_space<vmem>>, %arg7: memref<1x128xf32, #tpu.memory_space<vmem>>, %arg8: memref<1x128xf32, #tpu.memory_space<vmem>>, %arg9: memref<1x128x256xf32, #tpu.memory_space<vmem>>, %arg10: memref<128x128xf32, #tpu.memory_space<vmem>>) attributes {dimension_semantics = [#tpu.dimension_semantics<parallel>, #tpu.dimension_semantics<arbitrary>], iteration_bounds = array<i64: 2, 1>, scalar_prefetch = 0 : i64, scratch_operands = 0 : i64, tpu.core_type = #tpu.core_type<tc>, window_params = [{pipeline_mode = #tpu.pipeline_mode<synchronous>, transform_indices = @transform_0, window_bounds = array<i64: 128, 384>}, {transform_indices = @transform_1, window_bounds = array<i64: 128, 128>}, {transform_indices = @transform_2, window_bounds = array<i64: 128, 2>}, {pipeline_mode = #tpu.pipeline_mode<synchronous>, transform_indices = @transform_3, window_bounds = array<i64: 128, 128>}, {pipeline_mode = #tpu.pipeline_mode<synchronous>, transform_indices = @transform_4, window_bounds = array<i64: 1, 128>}, {pipeline_mode = #tpu.pipeline_mode<synchronous>, transform_indices = @transform_5, window_bounds = array<i64: 1, 128>}, {pipeline_mode = #tpu.pipeline_mode<synchronous>, transform_indices = @transform_6, window_bounds = array<i64: 1, 128>}, {transform_indices = @transform_7, window_bounds = array<i64: 1, 128, 256>}, {transform_indices = @transform_8, window_bounds = array<i64: 128, 128>}]} {
    %c0_i32 = arith.constant 0 : i32
    %0 = arith.cmpi eq, %arg1, %c0_i32 : i32
    %1 = arith.extui %0 : i1 to i32
    %c0_i32_0 = arith.constant 0 : i32
    %2 = arith.cmpi ne, %1, %c0_i32_0 : i32
    scf.if %2 {
      %cst_33 = arith.constant 0.000000e+00 : f32
      %73 = vector.broadcast %cst_33 : f32 to vector<1x128x256xf32>
      %c0_34 = arith.constant 0 : index
      %c0_35 = arith.constant 0 : index
      %c0_36 = arith.constant 0 : index
      %74 = vector.load %arg9[%c0_34, %c0_35, %c0_36] : memref<1x128x256xf32, #tpu.memory_space<vmem>>, vector<1x128x256xf32>
      tpu.vector_store %arg9[%c0_34, %c0_35, %c0_36], %73 {strides = array<i32>} : memref<1x128x256xf32, #tpu.memory_space<vmem>>, vector<1x128x256xf32>,
    } else {
    }
    %c0 = arith.constant 0 : index
    %c0_1 = arith.constant 0 : index
    %3 = vector.load %arg4[%c0, %c0_1] : memref<128x2xi32, #tpu.memory_space<vmem>>, vector<128x2xi32>
    %4 = tpu.iota {dimensions = array<i32: 1>} : vector<128x128xi32>
    %5 = vector.extract_strided_slice %3 {offsets = [0, 0], sizes = [128, 1], strides = [1, 1]} : vector<128x2xi32> to vector<128x1xi32>
    %6 = vector.broadcast %5 : vector<128x1xi32> to vector<128x128xi32>
    %7 = arith.cmpi eq, %4, %6 : vector<128x128xi32>
    %8 = arith.extui %7 : vector<128x128xi1> to vector<128x128xi32>
    %9 = arith.sitofp %8 : vector<128x128xi32> to vector<128x128xf32>
    %10 = vector.extract_strided_slice %3 {offsets = [0, 1], sizes = [128, 1], strides = [1, 1]} : vector<128x2xi32> to vector<128x1xi32>
    %11 = vector.broadcast %10 : vector<128x1xi32> to vector<128x128xi32>
    %12 = arith.cmpi eq, %4, %11 : vector<128x128xi32>
    %13 = arith.extui %12 : vector<128x128xi1> to vector<128x128xi32>
    %14 = arith.sitofp %13 : vector<128x128xi32> to vector<128x128xf32>
    %c0_2 = arith.constant 0 : index
    %c0_3 = arith.constant 0 : index
    %15 = vector.load %arg3[%c0_2, %c0_3] : memref<128x128xf32, #tpu.memory_space<vmem>>, vector<128x128xf32>
    %c0_4 = arith.constant 0 : index
    %c0_5 = arith.constant 0 : index
    %16 = vector.load %arg2[%c0_4, %c0_5] : memref<128x384xf32, #tpu.memory_space<vmem>>, vector<128x256xf32>
    %cst = arith.constant dense<0.000000e+00> : vector<128x256xf32>
    %17 = tpu.matmul %9, %16, %cst {dimension_numbers = #tpu.dot_dimension_numbers<[1], [0], [0], [1], [0, 0, 1, 1], [], []>} : vector<128x128xf32>, vector<128x256xf32>, vector<128x256xf32> -> vector<128x256xf32>
    %18 = vector.extract_strided_slice %17 {offsets = [0, 0], sizes = [128, 128], strides = [1, 1]} : vector<128x256xf32> to vector<128x128xf32>
    %19 = vector.extract_strided_slice %17 {offsets = [0, 128], sizes = [128, 128], strides = [1, 1]} : vector<128x256xf32> to vector<128x128xf32>
    %c0_6 = arith.constant 0 : index
    %c256 = arith.constant 256 : index
    %20 = vector.load %arg2[%c0_6, %c256] : memref<128x384xf32, #tpu.memory_space<vmem>>, vector<128x128xf32>
    %cst_7 = arith.constant dense<0.000000e+00> : vector<128x128xf32>
    %21 = tpu.matmul %14, %20, %cst_7 {dimension_numbers = #tpu.dot_dimension_numbers<[1], [0], [0], [1], [0, 0, 1, 1], [], []>} : vector<128x128xf32>, vector<128x128xf32>, vector<128x128xf32> -> vector<128x128xf32>
    %22 = arith.addf %18, %21 : vector<128x128xf32>
    %c0_8 = arith.constant 0 : index
    %c0_9 = arith.constant 0 : index
    %23 = vector.load %arg5[%c0_8, %c0_9] : memref<128x128xf32, #tpu.memory_space<vmem>>, vector<128x128xf32>
    %cst_10 = arith.constant dense<0.000000e+00> : vector<128x128xf32>
    %24 = tpu.matmul %15, %23, %cst_10 {dimension_numbers = #tpu.dot_dimension_numbers<[1], [0], [0], [1], [0, 0, 1, 1], [], []>} : vector<128x128xf32>, vector<128x128xf32>, vector<128x128xf32> -> vector<128x128xf32>
    %25 = arith.addf %22, %24 : vector<128x128xf32>
    %c0_11 = arith.constant 0 : index
    %c0_12 = arith.constant 0 : index
    %26 = vector.load %arg6[%c0_11, %c0_12] : memref<1x128xf32, #tpu.memory_space<vmem>>, vector<1x128xf32>
    %27 = vector.broadcast %26 : vector<1x128xf32> to vector<128x128xf32>
    %28 = arith.addf %25, %27 : vector<128x128xf32>
    %29 = arith.negf %28 : vector<128x128xf32>
    %30 = math.exp %29 : vector<128x128xf32>
    %cst_13 = arith.constant 1.000000e+00 : f32
    %31 = vector.broadcast %cst_13 : f32 to vector<128x128xf32>
    %32 = arith.addf %31, %30 : vector<128x128xf32>
    %33 = arith.divf %31, %32 : vector<128x128xf32>
    %34 = arith.mulf %19, %33 : vector<128x128xf32>
    %35 = tpu.concatenate %34, %33 in 1 : vector<128x128xf32>, vector<128x128xf32> -> vector<128x256xf32>
    %cst_14 = arith.constant dense<0.000000e+00> : vector<128x256xf32>
    %36 = tpu.matmul %14, %35, %cst_14 {dimension_numbers = #tpu.dot_dimension_numbers<[0], [0], [1], [1], [0, 1, 1, 1], [], []>} : vector<128x128xf32>, vector<128x256xf32>, vector<128x256xf32> -> vector<128x256xf32>
    %c0_15 = arith.constant 0 : index
    %c0_16 = arith.constant 0 : index
    %c0_17 = arith.constant 0 : index
    %37 = vector.load %arg9[%c0_15, %c0_16, %c0_17] : memref<1x128x256xf32, #tpu.memory_space<vmem>>, vector<1x128x256xf32>
    %38 = vector.shape_cast %36 : vector<128x256xf32> to vector<1x128x256xf32>
    %39 = arith.addf %37, %38 : vector<1x128x256xf32>
    %c0_18 = arith.constant 0 : index
    %c0_19 = arith.constant 0 : index
    %c0_20 = arith.constant 0 : index
    %40 = vector.load %arg9[%c0_18, %c0_19, %c0_20] : memref<1x128x256xf32, #tpu.memory_space<vmem>>, vector<1x128x256xf32>
    tpu.vector_store %arg9[%c0_18, %c0_19, %c0_20], %39 {strides = array<i32>} : memref<1x128x256xf32, #tpu.memory_space<vmem>>, vector<1x128x256xf32>,
    %c0_21 = arith.constant 0 : index
    %c0_22 = arith.constant 0 : index
    %41 = vector.load %arg7[%c0_21, %c0_22] : memref<1x128xf32, #tpu.memory_space<vmem>>, vector<1x128xf32>
    %c0_23 = arith.constant 0 : index
    %c0_24 = arith.constant 0 : index
    %42 = vector.load %arg8[%c0_23, %c0_24] : memref<1x128xf32, #tpu.memory_space<vmem>>, vector<1x128xf32>
    %cst_25 = arith.constant dense<0.000000e+00> : vector<128xf32>
    %43 = vector.multi_reduction <add>, %28, %cst_25 [1] : vector<128x128xf32> to vector<128xf32>
    %44 = vector.shape_cast %43 : vector<128xf32> to vector<128x1xf32>
    %cst_26 = arith.constant 1.280000e+02 : f32
    %45 = vector.broadcast %cst_26 : f32 to vector<128x1xf32>
    %46 = arith.divf %44, %45 : vector<128x1xf32>
    %47 = vector.broadcast %46 : vector<128x1xf32> to vector<128x128xf32>
    %48 = arith.subf %28, %47 : vector<128x128xf32>
    %49 = arith.mulf %48, %48 : vector<128x128xf32>
    %cst_27 = arith.constant dense<0.000000e+00> : vector<128xf32>
    %50 = vector.multi_reduction <add>, %49, %cst_27 [1] : vector<128x128xf32> to vector<128xf32>
    %51 = vector.shape_cast %50 : vector<128xf32> to vector<128x1xf32>
    %cst_28 = arith.constant 1.280000e+02 : f32
    %52 = vector.broadcast %cst_28 : f32 to vector<128x1xf32>
    %53 = arith.divf %51, %52 : vector<128x1xf32>
    %54 = vector.broadcast %46 : vector<128x1xf32> to vector<128x128xf32>
    %55 = arith.subf %28, %54 : vector<128x128xf32>
    %cst_29 = arith.constant 9.99999974E-6 : f32
    %56 = vector.broadcast %cst_29 : f32 to vector<128x1xf32>
    %57 = arith.addf %53, %56 : vector<128x1xf32>
    %58 = math.rsqrt %57 : vector<128x1xf32>
    %59 = vector.broadcast %58 : vector<128x1xf32> to vector<128x128xf32>
    %60 = arith.mulf %55, %59 : vector<128x128xf32>
    %61 = vector.broadcast %41 : vector<1x128xf32> to vector<128x128xf32>
    %62 = arith.mulf %60, %61 : vector<128x128xf32>
    %63 = vector.broadcast %42 : vector<1x128xf32> to vector<128x128xf32>
    %64 = arith.addf %62, %63 : vector<128x128xf32>
    %65 = arith.negf %64 : vector<128x128xf32>
    %66 = math.exp %65 : vector<128x128xf32>
    %cst_30 = arith.constant 1.000000e+00 : f32
    %67 = vector.broadcast %cst_30 : f32 to vector<128x128xf32>
    %68 = arith.addf %67, %66 : vector<128x128xf32>
    %69 = arith.divf %67, %68 : vector<128x128xf32>
    %70 = arith.mulf %64, %69 : vector<128x128xf32>
    %71 = arith.addf %15, %70 : vector<128x128xf32>
    %c0_31 = arith.constant 0 : index
    %c0_32 = arith.constant 0 : index
    %72 = vector.load %arg10[%c0_31, %c0_32] : memref<128x128xf32, #tpu.memory_space<vmem>>, vector<128x128xf32>
    tpu.vector_store %arg10[%c0_31, %c0_32], %71 {strides = array<i32>} : memref<128x128xf32, #tpu.memory_space<vmem>>, vector<128x128xf32>,
    return
  }
  func.func @transform_0(%arg0: i32, %arg1: i32) -> (i32, i32) {
    %c0_i32 = arith.constant 0 : i32
    %c0_i32_0 = arith.constant 0 : i32
    %c0_i32_1 = arith.constant 0 : i32
    return %c0_i32, %c0_i32_0 : i32, i32
  }
  func.func @transform_1(%arg0: i32, %arg1: i32) -> (i32, i32) {
    %c1_i32 = arith.constant 1 : i32
    %0 = arith.muli %arg0, %c1_i32 : i32
    %1 = arith.addi %0, %arg1 : i32
    %c0_i32 = arith.constant 0 : i32
    %c0_i32_0 = arith.constant 0 : i32
    return %1, %c0_i32 : i32, i32
  }
  func.func @transform_2(%arg0: i32, %arg1: i32) -> (i32, i32) {
    %c1_i32 = arith.constant 1 : i32
    %0 = arith.muli %arg0, %c1_i32 : i32
    %1 = arith.addi %0, %arg1 : i32
    %c0_i32 = arith.constant 0 : i32
    %c0_i32_0 = arith.constant 0 : i32
    return %1, %c0_i32 : i32, i32
  }
  func.func @transform_3(%arg0: i32, %arg1: i32) -> (i32, i32) {
    %c0_i32 = arith.constant 0 : i32
    %c0_i32_0 = arith.constant 0 : i32
    %c0_i32_1 = arith.constant 0 : i32
    return %c0_i32, %c0_i32_0 : i32, i32
  }
  func.func @transform_4(%arg0: i32, %arg1: i32) -> (i32, i32) {
    %c0_i32 = arith.constant 0 : i32
    %c0_i32_0 = arith.constant 0 : i32
    %c0_i32_1 = arith.constant 0 : i32
    return %c0_i32, %c0_i32_0 : i32, i32
  }
  func.func @transform_5(%arg0: i32, %arg1: i32) -> (i32, i32) {
    %c0_i32 = arith.constant 0 : i32
    %c0_i32_0 = arith.constant 0 : i32
    %c0_i32_1 = arith.constant 0 : i32
    return %c0_i32, %c0_i32_0 : i32, i32
  }
  func.func @transform_6(%arg0: i32, %arg1: i32) -> (i32, i32) {
    %c0_i32 = arith.constant 0 : i32
    %c0_i32_0 = arith.constant 0 : i32
    %c0_i32_1 = arith.constant 0 : i32
    return %c0_i32, %c0_i32_0 : i32, i32
  }
  func.func @transform_7(%arg0: i32, %arg1: i32) -> (i32, i32, i32) {
    %c0_i32 = arith.constant 0 : i32
    %c0_i32_0 = arith.constant 0 : i32
    %c0_i32_1 = arith.constant 0 : i32
    return %arg0, %c0_i32, %c0_i32_0 : i32, i32, i32
  }
  func.func @transform_8(%arg0: i32, %arg1: i32) -> (i32, i32) {
    %c1_i32 = arith.constant 1 : i32
    %0 = arith.muli %arg0, %c1_i32 : i32
    %1 = arith.addi %0, %arg1 : i32
    %c0_i32 = arith.constant 0 : i32
    %c0_i32_0 = arith.constant 0 : i32
    return %1, %c0_i32 : i32, i32
  }
}

</mosaic_0001>

<llo_original>
// kernel: tpu_custom_call.1
$region0: #{tpu_custom_call.1}
  #allocation0 [shape = 'u32[]', space=smem, size = 0x4, offset = 0x4, fixed_abs, tag = 'smem constant byte address 0x4 - core index']
  #allocation1 [shape = 'u32[144,128]{1,0:T(1,128)}', space=vmem, size = 0x12000, scoped, tag = 'internal scratch']
  %s0 = inlined_call_operand.hbm [shape: f32[128,384], index: 0, kind: input, shape index: {}]
  %s1 = inlined_call_operand.vmem [shape: f32[256,128], index: 1, kind: input, shape index: {}]
  %s2 = inlined_call_operand.vmem [shape: s32[256,2], index: 2, kind: input, shape index: {}]
  %s3 = inlined_call_operand.hbm [shape: f32[128,128], index: 3, kind: input, shape index: {}]
  %s4 = inlined_call_operand.vmem [shape: f32[1,128], index: 4, kind: input, shape index: {}]
  %s5 = inlined_call_operand.vmem [shape: f32[1,128], index: 5, kind: input, shape index: {}]
  %s6 = inlined_call_operand.vmem [shape: f32[1,128], index: 6, kind: input, shape index: {}]
  %s7 = inlined_call_operand.hbm [shape: f32[2,128,256], index: 7, kind: output, shape index: {0}]
  %s8 = inlined_call_operand.hbm [shape: f32[256,128], index: 8, kind: output, shape index: {1}]
  %9 = xla_tuple %s7, %s8
  %s10 = sld [smem:[#allocation0]]
  $region81: #{tpu_custom_call.1} parent=0
    _
  %s12 = ssub.s32 1, %s10
  %s13 = scalar_select 0, %s12, %s10
  $region1: #{tpu_custom_call.1} parent=0
    #allocation2 [shape = 'u8[196608]{0}', space=vmem, size = 0x30000, scoped, tag = 'input window, operand 0, single buffered']
    #allocation3 [shape = 's32[2]{0}', space=sflag, size = 0x8, scoped, tag = 'scoped memory for tpu_custom_call.1']
    #allocation4 [shape = 's32[2]{0}', space=sflag, size = 0x8, scoped, tag = 'scoped memory for tpu_custom_call.1']
    #allocation5 [shape = 'u8[65536]{0}', space=vmem, size = 0x10000, scoped, tag = 'input window, operand 3, single buffered']
    #allocation6 [shape = 's32[1]{0}', space=sflag, size = 0x4, scoped, tag = 'scoped memory for tpu_custom_call.1']
    #allocation7 [shape = 'u8[262144]{0}', space=vmem, size = 0x40000, scoped, tag = 'output window, operand 0']
    #allocation8 [shape = 'u8[131072]{0}', space=vmem, size = 0x20000, scoped, tag = 'output window, operand 1']
    #allocation9 [shape = 's32[2]{0}', space=sflag, size = 0x8, scoped, tag = 'scoped memory for tpu_custom_call.1']
    %14 = vsyncpa [#allocation3], 0
    %15 = vsyncpa [#allocation6], 0
    %16 = vsyncpa [#allocation4], 0
    %s17 = scalar_lea.sflag [#allocation4], 1
    %18 = vsyncpa %s17, 0
    %19 = vsyncpa [#allocation9], 0
    %s20 = scalar_lea.sflag [#allocation9], 1
    %21 = vsyncpa %s20, 0
    loop: start=0, step=1, limit=4
    $region2: #{tpu_custom_call.1} parent=1 // loop_pre_header
      _
    $region3: #{tpu_custom_call.1} parent=1 // loop_header
      %s23 = sphi 0, %s27
      %p24 = scmp.ge.s32.totalorder %s23, 4
      %s30 = sphi 0, %s42
      %s31 = sphi 0, %s38
      %s32 = sphi 0, %s30
      %s33 = sphi 0, %s31
      %s34 = sphi 0, %s32
      %s35 = sphi 0, %s33
      %s43 = sphi 0, %s43
      %s45 = sphi 0, %s43
      %s46 = sphi 0, %s45
      %s60 = sphi 0, %s46
      %s68 = sphi 0, %s70
      %s71 = sphi 0, %s68
      %s72 = sphi 0, %s71
      %s88 = sphi 0, %s72
      %s96 = sphi 0, %s98
      %s99 = sphi 0, %s96
      %s100 = sphi 0, %s99
      %s116 = sphi 0, %s100
      %s120 = sphi 0, %s120
      %s122 = sphi 0, %s120
      %s123 = sphi 0, %s122
      %s137 = sphi 0, %s123
      %s141 = sphi 0, %s141
      %s143 = sphi 0, %s141
      %s144 = sphi 0, %s143
      %s158 = sphi 0, %s144
      %s162 = sphi 0, %s162
      %s164 = sphi 0, %s162
      %s165 = sphi 0, %s164
      %s179 = sphi 0, %s165
      %s183 = sphi 0, %s183
      %s185 = sphi 0, %s183
      %s186 = sphi 0, %s185
      %s200 = sphi 0, %s186
      %s206 = sphi 0, %s208
      %s209 = sphi 0, %s206
      %s210 = sphi 0, %s209
      %s226 = sphi 0, %s210
      %s234 = sphi 0, %s236
      %s237 = sphi 0, %s234
      %s238 = sphi 0, %s237
      %s254 = sphi 0, %s238
    $region4: #{tpu_custom_call.1} parent=1 // loop_header_branch
      %26 = sbr.rel (%p24) target = $region8
    $region5: #{tpu_custom_call.1} parent=1 // loop_body
      %s28 = ssub.s32 %s23, 1
      %s29 = ssub.s32 %s23, 2
      %s36 = sadd.s32 1, %s31
      %p37 = scmp.ge.s32.totalorder %s36, 1
      %s38 = scalar_select %p37, 0, %s36
      %s39 = sadd.s32 1, %s30
      %s40 = scalar_select %p37, %s39, %s30
      %p41 = scmp.ge.s32.totalorder %s40, 2
      %s42 = scalar_select %p41, 0, %s40
      %s44 = sadd.s32 %s43, 1
      %p47 = scmp.eq.s32.totalorder %s23, 1
      %p48 = scmp.ne.s32.totalorder %s43, %s45
      %p49 = scmp.eq.s32.totalorder %s23, 0
      %p50 = por %p48, %p49
      %p51 = scmp.ne.s32.totalorder %s43, %s45
      %p52 = scmp.eq.s32.totalorder %s28, 1
      %p53 = por %p51, %p52
      %p54 = scmp.ne.s32.totalorder %s45, %s46
      %p55 = scmp.eq.s32.totalorder %s28, 0
      %p56 = por %p54, %p55
      %p57 = scmp.ne.s32.totalorder %s45, %s46
      %p58 = scmp.eq.s32.totalorder %s29, 1
      %p59 = por %p57, %p58
      %p61 = scmp.ne.s32.totalorder %s46, %s60
      %p62 = scmp.eq.s32.totalorder %s29, 0
      %p63 = por %p61, %p62
      %s64 = sadd.s32 %s30, %s31
      %s65 = sadd.s32 %s42, %s38
      %s66 = ssub.s32 %s64, %s65
      %p67 = scmp.eq.s32.totalorder %s66, 0
      %s69 = sadd.s32 %s68, 1
      %s70 = scalar_select %p67, %s68, %s69
      %p73 = pneg %p67
      %p74 = scmp.eq.s32.totalorder %s23, 1
      %p75 = por %p73, %p74
      %p76 = scmp.ne.s32.totalorder %s68, %s71
      %p77 = scmp.eq.s32.totalorder %s23, 0
      %p78 = por %p76, %p77
      %p79 = scmp.ne.s32.totalorder %s68, %s71
      %p80 = scmp.eq.s32.totalorder %s28, 1
      %p81 = por %p79, %p80
      %p82 = scmp.ne.s32.totalorder %s71, %s72
      %p83 = scmp.eq.s32.totalorder %s28, 0
      %p84 = por %p82, %p83
      %p85 = scmp.ne.s32.totalorder %s71, %s72
      %p86 = scmp.eq.s32.totalorder %s29, 1
      %p87 = por %p85, %p86
      %p89 = scmp.ne.s32.totalorder %s72, %s88
      %p90 = scmp.eq.s32.totalorder %s29, 0
      %p91 = por %p89, %p90
      %s92 = sadd.s32 %s30, %s31
      %s93 = sadd.s32 %s42, %s38
      %s94 = ssub.s32 %s92, %s93
      %p95 = scmp.eq.s32.totalorder %s94, 0
      %s97 = sadd.s32 %s96, 1
      %s98 = scalar_select %p95, %s96, %s97
      %p101 = pneg %p95
      %p102 = scmp.eq.s32.totalorder %s23, 1
      %p103 = por %p101, %p102
      %p104 = scmp.ne.s32.totalorder %s96, %s99
      %p105 = scmp.eq.s32.totalorder %s23, 0
      %p106 = por %p104, %p105
      %p107 = scmp.ne.s32.totalorder %s96, %s99
      %p108 = scmp.eq.s32.totalorder %s28, 1
      %p109 = por %p107, %p108
      %p110 = scmp.ne.s32.totalorder %s99, %s100
      %p111 = scmp.eq.s32.totalorder %s28, 0
      %p112 = por %p110, %p111
      %p113 = scmp.ne.s32.totalorder %s99, %s100
      %p114 = scmp.eq.s32.totalorder %s29, 1
      %p115 = por %p113, %p114
      %p117 = scmp.ne.s32.totalorder %s100, %s116
      %p118 = scmp.eq.s32.totalorder %s29, 0
      %p119 = por %p117, %p118
      %s121 = sadd.s32 %s120, 1
      %p124 = scmp.eq.s32.totalorder %s23, 1
      %p125 = scmp.ne.s32.totalorder %s120, %s122
      %p126 = scmp.eq.s32.totalorder %s23, 0
      %p127 = por %p125, %p126
      %p128 = scmp.ne.s32.totalorder %s120, %s122
      %p129 = scmp.eq.s32.totalorder %s28, 1
      %p130 = por %p128, %p129
      %p131 = scmp.ne.s32.totalorder %s122, %s123
      %p132 = scmp.eq.s32.totalorder %s28, 0
      %p133 = por %p131, %p132
      %p134 = scmp.ne.s32.totalorder %s122, %s123
      %p135 = scmp.eq.s32.totalorder %s29, 1
      %p136 = por %p134, %p135
      %p138 = scmp.ne.s32.totalorder %s123, %s137
      %p139 = scmp.eq.s32.totalorder %s29, 0
      %p140 = por %p138, %p139
      %s142 = sadd.s32 %s141, 1
      %p145 = scmp.eq.s32.totalorder %s23, 1
      %p146 = scmp.ne.s32.totalorder %s141, %s143
      %p147 = scmp.eq.s32.totalorder %s23, 0
      %p148 = por %p146, %p147
      %p149 = scmp.ne.s32.totalorder %s141, %s143
      %p150 = scmp.eq.s32.totalorder %s28, 1
      %p151 = por %p149, %p150
      %p152 = scmp.ne.s32.totalorder %s143, %s144
      %p153 = scmp.eq.s32.totalorder %s28, 0
      %p154 = por %p152, %p153
      %p155 = scmp.ne.s32.totalorder %s143, %s144
      %p156 = scmp.eq.s32.totalorder %s29, 1
      %p157 = por %p155, %p156
      %p159 = scmp.ne.s32.totalorder %s144, %s158
      %p160 = scmp.eq.s32.totalorder %s29, 0
      %p161 = por %p159, %p160
      %s163 = sadd.s32 %s162, 1
      %p166 = scmp.eq.s32.totalorder %s23, 1
      %p167 = scmp.ne.s32.totalorder %s162, %s164
      %p168 = scmp.eq.s32.totalorder %s23, 0
      %p169 = por %p167, %p168
      %p170 = scmp.ne.s32.totalorder %s162, %s164
      %p171 = scmp.eq.s32.totalorder %s28, 1
      %p172 = por %p170, %p171
      %p173 = scmp.ne.s32.totalorder %s164, %s165
      %p174 = scmp.eq.s32.totalorder %s28, 0
      %p175 = por %p173, %p174
      %p176 = scmp.ne.s32.totalorder %s164, %s165
      %p177 = scmp.eq.s32.totalorder %s29, 1
      %p178 = por %p176, %p177
      %p180 = scmp.ne.s32.totalorder %s165, %s179
      %p181 = scmp.eq.s32.totalorder %s29, 0
      %p182 = por %p180, %p181
      %s184 = sadd.s32 %s183, 1
      %p187 = scmp.eq.s32.totalorder %s23, 1
      %p188 = scmp.ne.s32.totalorder %s183, %s185
      %p189 = scmp.eq.s32.totalorder %s23, 0
      %p190 = por %p188, %p189
      %p191 = scmp.ne.s32.totalorder %s183, %s185
      %p192 = scmp.eq.s32.totalorder %s28, 1
      %p193 = por %p191, %p192
      %p194 = scmp.ne.s32.totalorder %s185, %s186
      %p195 = scmp.eq.s32.totalorder %s28, 0
      %p196 = por %p194, %p195
      %p197 = scmp.ne.s32.totalorder %s185, %s186
      %p198 = scmp.eq.s32.totalorder %s29, 1
      %p199 = por %p197, %p198
      %p201 = scmp.ne.s32.totalorder %s186, %s200
      %p202 = scmp.eq.s32.totalorder %s29, 0
      %p203 = por %p201, %p202
      %s204 = ssub.s32 %s30, %s42
      %p205 = scmp.eq.s32.totalorder %s204, 0
      %s207 = sadd.s32 %s206, 1
      %s208 = scalar_select %p205, %s206, %s207
      %p211 = pneg %p205
      %p212 = scmp.eq.s32.totalorder %s23, 1
      %p213 = por %p211, %p212
      %p214 = scmp.ne.s32.totalorder %s206, %s209
      %p215 = scmp.eq.s32.totalorder %s23, 0
      %p216 = por %p214, %p215
      %p217 = scmp.ne.s32.totalorder %s206, %s209
      %p218 = scmp.eq.s32.totalorder %s28, 1
      %p219 = por %p217, %p218
      %p220 = scmp.ne.s32.totalorder %s209, %s210
      %p221 = scmp.eq.s32.totalorder %s28, 0
      %p222 = por %p220, %p221
      %p223 = scmp.ne.s32.totalorder %s209, %s210
      %p224 = scmp.eq.s32.totalorder %s29, 1
      %p225 = por %p223, %p224
      %p227 = scmp.ne.s32.totalorder %s210, %s226
      %p228 = scmp.eq.s32.totalorder %s29, 0
      %p229 = por %p227, %p228
      %s230 = sadd.s32 %s30, %s31
      %s231 = sadd.s32 %s42, %s38
      %s232 = ssub.s32 %s230, %s231
      %p233 = scmp.eq.s32.totalorder %s232, 0
      %s235 = sadd.s32 %s234, 1
      %s236 = scalar_select %p233, %s234, %s235
      %p239 = pneg %p233
      %p240 = scmp.eq.s32.totalorder %s23, 1
      %p241 = por %p239, %p240
      %p242 = scmp.ne.s32.totalorder %s234, %s237
      %p243 = scmp.eq.s32.totalorder %s23, 0
      %p244 = por %p242, %p243
      %p245 = scmp.ne.s32.totalorder %s234, %s237
      %p246 = scmp.eq.s32.totalorder %s28, 1
      %p247 = por %p245, %p246
      %p248 = scmp.ne.s32.totalorder %s237, %s238
      %p249 = scmp.eq.s32.totalorder %s28, 0
      %p250 = por %p248, %p249
      %p251 = scmp.ne.s32.totalorder %s237, %s238
      %p252 = scmp.eq.s32.totalorder %s29, 1
      %p253 = por %p251, %p252
      %p255 = scmp.ne.s32.totalorder %s238, %s254
      %p256 = scmp.eq.s32.totalorder %s29, 0
      %p257 = por %p255, %p256
      %p258 = scmp.le.s32.totalorder 1, %s23
      %p259 = scmp.lt.s32.totalorder %s23, 3
      %p260 = pnand %p258, %p259
      %p261 = pneg %p260
      // Predicated region
      $region9: #{tpu_custom_call.1} parent=5 // pred_check
        _
      $region10: #{tpu_custom_call.1} parent=5 // pred_check_branch
        %263 = sbr.rel (%p260) target = $region12
      $region11: #{tpu_custom_call.1} parent=5 // pred_region
        %s264 = ssub.s32 %s23, 1
        // Predicated region
        $region13: #{tpu_custom_call.1} parent=11 // pred_check
          %p265 = pneg %p56
        $region14: #{tpu_custom_call.1} parent=11 // pred_check_branch
          %267 = sbr.rel (%p265) target = $region16
        $region15: #{tpu_custom_call.1} parent=11 // pred_region
          %s269 = ssub.s32 6144, 6144
          %270 = vsyncadd [#allocation3], %s269
          %s271 = sshll.u32 [#allocation2], 4
          %s272 = int_to_ptr.vmem [resolvable:$true] %s271
          %277 = dma.hbm_to_vmem [thread:$0]  %s0, 6144, %s272, [#allocation3], 384, 384, 24
        $region16: #{tpu_custom_call.1} parent=11 // pred_fallthru
          _
        // Predicated region
        $region17: #{tpu_custom_call.1} parent=11 // pred_check
          %p278 = pneg %p133
        $region18: #{tpu_custom_call.1} parent=11 // pred_check_branch
          %280 = sbr.rel (%p278) target = $region20
        $region19: #{tpu_custom_call.1} parent=11 // pred_region
          %s282 = ssub.s32 2048, 2048
          %283 = vsyncadd [#allocation6], %s282
          %s284 = sshll.u32 [#allocation5], 4
          %s285 = int_to_ptr.vmem [resolvable:$true] %s284
          %290 = dma.hbm_to_vmem [thread:$0]  %s3, 2048, %s285, [#allocation6], 128, 128, 8
        $region20: #{tpu_custom_call.1} parent=11 // pred_fallthru
          _
        // Predicated region
        $region21: #{tpu_custom_call.1} parent=11 // pred_check
          %p291 = pneg %p154
        $region22: #{tpu_custom_call.1} parent=11 // pred_check_branch
          %293 = sbr.rel (%p291) target = $region24
        $region23: #{tpu_custom_call.1} parent=11 // pred_region
          _
        $region24: #{tpu_custom_call.1} parent=11 // pred_fallthru
          _
        // Predicated region
        $region25: #{tpu_custom_call.1} parent=11 // pred_check
          %p294 = pneg %p175
        $region26: #{tpu_custom_call.1} parent=11 // pred_check_branch
          %296 = sbr.rel (%p294) target = $region28
        $region27: #{tpu_custom_call.1} parent=11 // pred_region
          _
        $region28: #{tpu_custom_call.1} parent=11 // pred_fallthru
          _
        // Predicated region
        $region29: #{tpu_custom_call.1} parent=11 // pred_check
          %p297 = pneg %p196
        $region30: #{tpu_custom_call.1} parent=11 // pred_check_branch
          %299 = sbr.rel (%p297) target = $region32
        $region31: #{tpu_custom_call.1} parent=11 // pred_region
          _
        $region32: #{tpu_custom_call.1} parent=11 // pred_fallthru
          _
      $region12: #{tpu_custom_call.1} parent=5 // pred_fallthru
        _
      %p300 = scmp.lt.s32.totalorder %s23, 2
      // Predicated region
      $region33: #{tpu_custom_call.1} parent=5 // pred_check
        %p301 = pneg %p300
      $region34: #{tpu_custom_call.1} parent=5 // pred_check_branch
        %303 = sbr.rel (%p301) target = $region36
      $region35: #{tpu_custom_call.1} parent=5 // pred_region
        // Predicated region
        $region37: #{tpu_custom_call.1} parent=35 // pred_check
          %p304 = pneg %p78
        $region38: #{tpu_custom_call.1} parent=35 // pred_check_branch
          %306 = sbr.rel (%p304) target = $region40
        $region39: #{tpu_custom_call.1} parent=35 // pred_region
          %s307 = sadd.s32 %s30, %s31
          %s308 = smul.u32 16, %s307
          %p309 = scmp.lt.s32.totalorder %s308, 31
          %s310 = scalar_select %p309, %s308, 31
          %s311 = smul.addr %s310, 8
          %s312 = scalar_lea.vmem %s1, %s311
          %s313 = sadd.s32 %s30, %s31
          %s314 = smul.u32 16, %s313
        $region40: #{tpu_custom_call.1} parent=35 // pred_fallthru
          _
        // Predicated region
        $region41: #{tpu_custom_call.1} parent=35 // pred_check
          %p315 = pneg %p106
        $region42: #{tpu_custom_call.1} parent=35 // pred_check_branch
          %317 = sbr.rel (%p315) target = $region44
        $region43: #{tpu_custom_call.1} parent=35 // pred_region
          %s318 = sadd.s32 %s30, %s31
          %s319 = smul.u32 16, %s318
          %p320 = scmp.lt.s32.totalorder %s319, 31
          %s321 = scalar_select %p320, %s319, 31
          %s322 = smul.addr %s321, 8
          %s323 = scalar_lea.vmem %s2, %s322
          %s324 = sadd.s32 %s30, %s31
          %s325 = smul.u32 16, %s324
        $region44: #{tpu_custom_call.1} parent=35 // pred_fallthru
          _
      $region36: #{tpu_custom_call.1} parent=5 // pred_fallthru
        _
      %p326 = scmp.le.s32.totalorder 1, %s23
      %p327 = scmp.lt.s32.totalorder %s23, 3
      %p328 = pnand %p326, %p327
      %p329 = pneg %p328
      // Predicated region
      $region45: #{tpu_custom_call.1} parent=5 // pred_check
        _
      $region46: #{tpu_custom_call.1} parent=5 // pred_check_branch
        %331 = sbr.rel (%p328) target = $region48
      $region47: #{tpu_custom_call.1} parent=5 // pred_region
        %s332 = ssub.s32 %s23, 1
        // Predicated region
        $region49: #{tpu_custom_call.1} parent=47 // pred_check
          %p333 = pneg %p56
        $region50: #{tpu_custom_call.1} parent=47 // pred_check_branch
          %335 = sbr.rel (%p333) target = $region52
        $region51: #{tpu_custom_call.1} parent=47 // pred_region
          %336 = dma.done [#allocation3], 6144
        $region52: #{tpu_custom_call.1} parent=47 // pred_fallthru
          _
        // Predicated region
        $region53: #{tpu_custom_call.1} parent=47 // pred_check
          %p337 = pneg %p133
        $region54: #{tpu_custom_call.1} parent=47 // pred_check_branch
          %339 = sbr.rel (%p337) target = $region56
        $region55: #{tpu_custom_call.1} parent=47 // pred_region
          %340 = dma.done [#allocation6], 2048
        $region56: #{tpu_custom_call.1} parent=47 // pred_fallthru
          _
        %p341 = pneg %p56
        %p342 = pneg %p53
        %s343 = sadd.s32 %s32, %s33
        %s344 = smul.u32 16, %s343
        %p345 = scmp.lt.s32.totalorder %s344, 31
        %s346 = scalar_select %p345, %s344, 31
        %s347 = smul.addr %s346, 8
        %s348 = scalar_lea.vmem %s1, %s347
        %p349 = pneg %p84
        %p350 = pneg %p81
        %s351 = sadd.s32 %s32, %s33
        %s352 = smul.u32 16, %s351
        %p353 = scmp.lt.s32.totalorder %s352, 31
        %s354 = scalar_select %p353, %s352, 31
        %s355 = smul.addr %s354, 8
        %s356 = scalar_lea.vmem %s2, %s355
        %p357 = pneg %p112
        %p358 = pneg %p109
        %p359 = pneg %p133
        %p360 = pneg %p130
        %p361 = pneg %p154
        %p362 = pneg %p151
        %p363 = pneg %p175
        %p364 = pneg %p172
        %p365 = pneg %p196
        %p366 = pneg %p193
        %p367 = pneg %p222
        %p368 = pneg %p219
        %s369 = sand.u32 %s209, 1
        %s370 = scalar_lea.sflag [#allocation4], %s369
        %s371 = sand.u32 %s209, 1
        %s372 = smul.addr %s371, 256
        %s373 = scalar_lea.vmem [#allocation7], %s372
        %p374 = pneg %p250
        %p375 = pneg %p247
        %s376 = sand.u32 %s237, 1
        %s377 = scalar_lea.sflag [#allocation9], %s376
        %s378 = sand.u32 %s237, 1
        %s379 = smul.addr %s378, 128
        %s380 = scalar_lea.vmem [#allocation8], %s379
        %s381 = sadd.s32 %s32, %s33
        %s382 = smul.u32 16, %s381
        %p383 = scmp.lt.s32.totalorder %s382, 31
        %s384 = scalar_select %p383, %s382, 31
        %s385 = smul.addr %s384, 8
        %s386 = scalar_lea.vmem %s1, %s385
        %s387 = sadd.s32 %s32, %s33
        %s388 = smul.u32 16, %s387
        %s389 = sadd.s32 %s32, %s33
        %s390 = smul.u32 16, %s389
        %p391 = scmp.lt.s32.totalorder %s390, 31
        %s392 = scalar_select %p391, %s390, 31
        %s393 = smul.addr %s392, 8
        %s394 = scalar_lea.vmem %s2, %s393
        %s395 = sadd.s32 %s32, %s33
        %s396 = smul.u32 16, %s395
        %s397 = sadd.s32 %s32, %s33
        %s398 = smul.u32 16, %s397
        %p399 = scmp.eq.s32.totalorder %s33, 0
        // Predicated region
        $region57: #{tpu_custom_call.1} parent=47 // pred_check
          %p400 = pneg %p399
        $region58: #{tpu_custom_call.1} parent=47 // pred_check_branch
          %402 = sbr.rel (%p400) target = $region60
        $region59: #{tpu_custom_call.1} parent=47 // pred_region
          %403 = vst [vmem:[%s373] sm:$0xff] 0.0
          %404 = vst [vmem:[%s373 + $0x8] sm:$0xff] 0.0
          %405 = vst [vmem:[%s373 + $0x10] sm:$0xff] 0.0
          %406 = vst [vmem:[%s373 + $0x18] sm:$0xff] 0.0
          %407 = vst [vmem:[%s373 + $0x20] sm:$0xff] 0.0
          %408 = vst [vmem:[%s373 + $0x28] sm:$0xff] 0.0
          %409 = vst [vmem:[%s373 + $0x30] sm:$0xff] 0.0
          %410 = vst [vmem:[%s373 + $0x38] sm:$0xff] 0.0
          %411 = vst [vmem:[%s373 + $0x40] sm:$0xff] 0.0
          %412 = vst [vmem:[%s373 + $0x48] sm:$0xff] 0.0
          %413 = vst [vmem:[%s373 + $0x50] sm:$0xff] 0.0
          %414 = vst [vmem:[%s373 + $0x58] sm:$0xff] 0.0
          %415 = vst [vmem:[%s373 + $0x60] sm:$0xff] 0.0
          %416 = vst [vmem:[%s373 + $0x68] sm:$0xff] 0.0
          %417 = vst [vmem:[%s373 + $0x70] sm:$0xff] 0.0
          %418 = vst [vmem:[%s373 + $0x78] sm:$0xff] 0.0
          %419 = vst [vmem:[%s373 + $0x80] sm:$0xff] 0.0
          %420 = vst [vmem:[%s373 + $0x88] sm:$0xff] 0.0
          %421 = vst [vmem:[%s373 + $0x90] sm:$0xff] 0.0
          %422 = vst [vmem:[%s373 + $0x98] sm:$0xff] 0.0
          %423 = vst [vmem:[%s373 + $0xa0] sm:$0xff] 0.0
          %424 = vst [vmem:[%s373 + $0xa8] sm:$0xff] 0.0
          %425 = vst [vmem:[%s373 + $0xb0] sm:$0xff] 0.0
          %426 = vst [vmem:[%s373 + $0xb8] sm:$0xff] 0.0
          %427 = vst [vmem:[%s373 + $0xc0] sm:$0xff] 0.0
          %428 = vst [vmem:[%s373 + $0xc8] sm:$0xff] 0.0
          %429 = vst [vmem:[%s373 + $0xd0] sm:$0xff] 0.0
          %430 = vst [vmem:[%s373 + $0xd8] sm:$0xff] 0.0
          %431 = vst [vmem:[%s373 + $0xe0] sm:$0xff] 0.0
          %432 = vst [vmem:[%s373 + $0xe8] sm:$0xff] 0.0
          %433 = vst [vmem:[%s373 + $0xf0] sm:$0xff] 0.0
          %434 = vst [vmem:[%s373 + $0xf8] sm:$0xff] 0.0
        $region60: #{tpu_custom_call.1} parent=47 // pred_fallthru
          _
        %v435 = vld [vmem:[%s394] sm:$0xff]
        %v436 = vld [vmem:[%s394 + $0x8] sm:$0xff]
        %v437 = vld [vmem:[%s394 + $0x10] sm:$0xff]
        %v438 = vld [vmem:[%s394 + $0x18] sm:$0xff]
        %v439 = vld [vmem:[%s394 + $0x20] sm:$0xff]
        %v440 = vld [vmem:[%s394 + $0x28] sm:$0xff]
        %v441 = vld [vmem:[%s394 + $0x30] sm:$0xff]
        %v442 = vld [vmem:[%s394 + $0x38] sm:$0xff]
        %v443 = vld [vmem:[%s394 + $0x40] sm:$0xff]
        %v444 = vld [vmem:[%s394 + $0x48] sm:$0xff]
        %v445 = vld [vmem:[%s394 + $0x50] sm:$0xff]
        %v446 = vld [vmem:[%s394 + $0x58] sm:$0xff]
        %v447 = vld [vmem:[%s394 + $0x60] sm:$0xff]
        %v448 = vld [vmem:[%s394 + $0x68] sm:$0xff]
        %v449 = vld [vmem:[%s394 + $0x70] sm:$0xff]
        %v450 = vld [vmem:[%s394 + $0x78] sm:$0xff]
        %v451 = vlaneseq
        %v452 = vand.u32 %v451, 127
        %453 = vset.pattern.permute.xlu0 0
        %454 = vperm.xlu0 %453, %v435
        %v455 = vpop.permute.xlu0 %454
        %456 = vset.pattern.permute.xlu0 0
        %457 = vperm.xlu0 %456, %v436
        %v458 = vpop.permute.xlu0 %457
        %459 = vset.pattern.permute.xlu0 0
        %460 = vperm.xlu0 %459, %v437
        %v461 = vpop.permute.xlu0 %460
        %462 = vset.pattern.permute.xlu0 0
        %463 = vperm.xlu0 %462, %v438
        %v464 = vpop.permute.xlu0 %463
        %465 = vset.pattern.permute.xlu0 0
        %466 = vperm.xlu0 %465, %v439
        %v467 = vpop.permute.xlu0 %466
        %468 = vset.pattern.permute.xlu0 0
        %469 = vperm.xlu0 %468, %v440
        %v470 = vpop.permute.xlu0 %469
        %471 = vset.pattern.permute.xlu0 0
        %472 = vperm.xlu0 %471, %v441
        %v473 = vpop.permute.xlu0 %472
        %474 = vset.pattern.permute.xlu0 0
        %475 = vperm.xlu0 %474, %v442
        %v476 = vpop.permute.xlu0 %475
        %477 = vset.pattern.permute.xlu0 0
        %478 = vperm.xlu0 %477, %v443
        %v479 = vpop.permute.xlu0 %478
        %480 = vset.pattern.permute.xlu0 0
        %481 = vperm.xlu0 %480, %v444
        %v482 = vpop.permute.xlu0 %481
        %483 = vset.pattern.permute.xlu0 0
        %484 = vperm.xlu0 %483, %v445
        %v485 = vpop.permute.xlu0 %484
        %486 = vset.pattern.permute.xlu0 0
        %487 = vperm.xlu0 %486, %v446
        %v488 = vpop.permute.xlu0 %487
        %489 = vset.pattern.permute.xlu0 0
        %490 = vperm.xlu0 %489, %v447
        %v491 = vpop.permute.xlu0 %490
        %492 = vset.pattern.permute.xlu0 0
        %493 = vperm.xlu0 %492, %v448
        %v494 = vpop.permute.xlu0 %493
        %495 = vset.pattern.permute.xlu0 0
        %496 = vperm.xlu0 %495, %v449
        %v497 = vpop.permute.xlu0 %496
        %498 = vset.pattern.permute.xlu0 0
        %499 = vperm.xlu0 %498, %v450
        %v500 = vpop.permute.xlu0 %499
        %vm501 = vcmp.eq.s32.totalorder %v452, %v455
        %vm502 = vcmp.eq.s32.totalorder %v452, %v458
        %vm503 = vcmp.eq.s32.totalorder %v452, %v461
        %vm504 = vcmp.eq.s32.totalorder %v452, %v464
        %vm505 = vcmp.eq.s32.totalorder %v452, %v467
        %vm506 = vcmp.eq.s32.totalorder %v452, %v470
        %vm507 = vcmp.eq.s32.totalorder %v452, %v473
        %vm508 = vcmp.eq.s32.totalorder %v452, %v476
        %vm509 = vcmp.eq.s32.totalorder %v452, %v479
        %vm510 = vcmp.eq.s32.totalorder %v452, %v482
        %vm511 = vcmp.eq.s32.totalorder %v452, %v485
        %vm512 = vcmp.eq.s32.totalorder %v452, %v488
        %vm513 = vcmp.eq.s32.totalorder %v452, %v491
        %vm514 = vcmp.eq.s32.totalorder %v452, %v494
        %vm515 = vcmp.eq.s32.totalorder %v452, %v497
        %vm516 = vcmp.eq.s32.totalorder %v452, %v500
        %v517 = vsel %vm501, 1, 0
        %v518 = vsel %vm502, 1, 0
        %v519 = vsel %vm503, 1, 0
        %v520 = vsel %vm504, 1, 0
        %v521 = vsel %vm505, 1, 0
        %v522 = vsel %vm506, 1, 0
        %v523 = vsel %vm507, 1, 0
        %v524 = vsel %vm508, 1, 0
        %v525 = vsel %vm509, 1, 0
        %v526 = vsel %vm510, 1, 0
        %v527 = vsel %vm511, 1, 0
        %v528 = vsel %vm512, 1, 0
        %v529 = vsel %vm513, 1, 0
        %v530 = vsel %vm514, 1, 0
        %v531 = vsel %vm515, 1, 0
        %v532 = vsel %vm516, 1, 0
        %v533 = vcvt.s32.f32 %v517
        %v534 = vcvt.s32.f32 %v518
        %v535 = vcvt.s32.f32 %v519
        %v536 = vcvt.s32.f32 %v520
        %v537 = vcvt.s32.f32 %v521
        %v538 = vcvt.s32.f32 %v522
        %v539 = vcvt.s32.f32 %v523
        %v540 = vcvt.s32.f32 %v524
        %v541 = vcvt.s32.f32 %v525
        %v542 = vcvt.s32.f32 %v526
        %v543 = vcvt.s32.f32 %v527
        %v544 = vcvt.s32.f32 %v528
        %v545 = vcvt.s32.f32 %v529
        %v546 = vcvt.s32.f32 %v530
        %v547 = vcvt.s32.f32 %v531
        %v548 = vcvt.s32.f32 %v532
        %549 = vset.pattern.permute.xlu0 1
        %550 = vperm.xlu0 %549, %v435
        %v551 = vpop.permute.xlu0 %550
        %552 = vset.pattern.permute.xlu0 1
        %553 = vperm.xlu0 %552, %v436
        %v554 = vpop.permute.xlu0 %553
        %555 = vset.pattern.permute.xlu0 1
        %556 = vperm.xlu0 %555, %v437
        %v557 = vpop.permute.xlu0 %556
        %558 = vset.pattern.permute.xlu0 1
        %559 = vperm.xlu0 %558, %v438
        %v560 = vpop.permute.xlu0 %559
        %561 = vset.pattern.permute.xlu0 1
        %562 = vperm.xlu0 %561, %v439
        %v563 = vpop.permute.xlu0 %562
        %564 = vset.pattern.permute.xlu0 1
        %565 = vperm.xlu0 %564, %v440
        %v566 = vpop.permute.xlu0 %565
        %567 = vset.pattern.permute.xlu0 1
        %568 = vperm.xlu0 %567, %v441
        %v569 = vpop.permute.xlu0 %568
        %570 = vset.pattern.permute.xlu0 1
        %571 = vperm.xlu0 %570, %v442
        %v572 = vpop.permute.xlu0 %571
        %573 = vset.pattern.permute.xlu0 1
        %574 = vperm.xlu0 %573, %v443
        %v575 = vpop.permute.xlu0 %574
        %576 = vset.pattern.permute.xlu0 1
        %577 = vperm.xlu0 %576, %v444
        %v578 = vpop.permute.xlu0 %577
        %579 = vset.pattern.permute.xlu0 1
        %580 = vperm.xlu0 %579, %v445
        %v581 = vpop.permute.xlu0 %580
        %582 = vset.pattern.permute.xlu0 1
        %583 = vperm.xlu0 %582, %v446
        %v584 = vpop.permute.xlu0 %583
        %585 = vset.pattern.permute.xlu0 1
        %586 = vperm.xlu0 %585, %v447
        %v587 = vpop.permute.xlu0 %586
        %588 = vset.pattern.permute.xlu0 1
        %589 = vperm.xlu0 %588, %v448
        %v590 = vpop.permute.xlu0 %589
        %591 = vset.pattern.permute.xlu0 1
        %592 = vperm.xlu0 %591, %v449
        %v593 = vpop.permute.xlu0 %592
        %594 = vset.pattern.permute.xlu0 1
        %595 = vperm.xlu0 %594, %v450
        %v596 = vpop.permute.xlu0 %595
        %vm597 = vcmp.eq.s32.totalorder %v452, %v551
        %vm598 = vcmp.eq.s32.totalorder %v452, %v554
        %vm599 = vcmp.eq.s32.totalorder %v452, %v557
        %vm600 = vcmp.eq.s32.totalorder %v452, %v560
        %vm601 = vcmp.eq.s32.totalorder %v452, %v563
        %vm602 = vcmp.eq.s32.totalorder %v452, %v566
        %vm603 = vcmp.eq.s32.totalorder %v452, %v569
        %vm604 = vcmp.eq.s32.totalorder %v452, %v572
        %vm605 = vcmp.eq.s32.totalorder %v452, %v575
        %vm606 = vcmp.eq.s32.totalorder %v452, %v578
        %vm607 = vcmp.eq.s32.totalorder %v452, %v581
        %vm608 = vcmp.eq.s32.totalorder %v452, %v584
        %vm609 = vcmp.eq.s32.totalorder %v452, %v587
        %vm610 = vcmp.eq.s32.totalorder %v452, %v590
        %vm611 = vcmp.eq.s32.totalorder %v452, %v593
        %vm612 = vcmp.eq.s32.totalorder %v452, %v596
        %v613 = vsel %vm597, 1, 0
        %v614 = vsel %vm598, 1, 0
        %v615 = vsel %vm599, 1, 0
        %v616 = vsel %vm600, 1, 0
        %v617 = vsel %vm601, 1, 0
        %v618 = vsel %vm602, 1, 0
        %v619 = vsel %vm603, 1, 0
        %v620 = vsel %vm604, 1, 0
        %v621 = vsel %vm605, 1, 0
        %v622 = vsel %vm606, 1, 0
        %v623 = vsel %vm607, 1, 0
        %v624 = vsel %vm608, 1, 0
        %v625 = vsel %vm609, 1, 0
        %v626 = vsel %vm610, 1, 0
        %v627 = vsel %vm611, 1, 0
        %v628 = vsel %vm612, 1, 0
        %v629 = vcvt.s32.f32 %v613
        %v630 = vcvt.s32.f32 %v614
        %v631 = vcvt.s32.f32 %v615
        %v632 = vcvt.s32.f32 %v616
        %v633 = vcvt.s32.f32 %v617
        %v634 = vcvt.s32.f32 %v618
        %v635 = vcvt.s32.f32 %v619
        %v636 = vcvt.s32.f32 %v620
        %v637 = vcvt.s32.f32 %v621
        %v638 = vcvt.s32.f32 %v622
        %v639 = vcvt.s32.f32 %v623
        %v640 = vcvt.s32.f32 %v624
        %v641 = vcvt.s32.f32 %v625
        %v642 = vcvt.s32.f32 %v626
        %v643 = vcvt.s32.f32 %v627
        %v644 = vcvt.s32.f32 %v628
        %v645 = vld [vmem:[%s386] sm:$0xff]
        %v646 = vld [vmem:[%s386 + $0x8] sm:$0xff]
        %v647 = vld [vmem:[%s386 + $0x10] sm:$0xff]
        %v648 = vld [vmem:[%s386 + $0x18] sm:$0xff]
        %v649 = vld [vmem:[%s386 + $0x20] sm:$0xff]
        %v650 = vld [vmem:[%s386 + $0x28] sm:$0xff]
        %v651 = vld [vmem:[%s386 + $0x30] sm:$0xff]
        %v652 = vld [vmem:[%s386 + $0x38] sm:$0xff]
        %v653 = vld [vmem:[%s386 + $0x40] sm:$0xff]
        %v654 = vld [vmem:[%s386 + $0x48] sm:$0xff]
        %v655 = vld [vmem:[%s386 + $0x50] sm:$0xff]
        %v656 = vld [vmem:[%s386 + $0x58] sm:$0xff]
        %v657 = vld [vmem:[%s386 + $0x60] sm:$0xff]
        %v658 = vld [vmem:[%s386 + $0x68] sm:$0xff]
        %v659 = vld [vmem:[%s386 + $0x70] sm:$0xff]
        %v660 = vld [vmem:[%s386 + $0x78] sm:$0xff]
        %v661 = vld [vmem:[#allocation2] sm:$0xff]
        %v662 = vld [vmem:[#allocation2 + $0x8] sm:$0xff]
        %v663 = vld [vmem:[#allocation2 + $0x18] sm:$0xff]
        %v664 = vld [vmem:[#allocation2 + $0x20] sm:$0xff]
        %v665 = vld [vmem:[#allocation2 + $0x30] sm:$0xff]
        %v666 = vld [vmem:[#allocation2 + $0x38] sm:$0xff]
        %v667 = vld [vmem:[#allocation2 + $0x48] sm:$0xff]
        %v668 = vld [vmem:[#allocation2 + $0x50] sm:$0xff]
        %v669 = vld [vmem:[#allocation2 + $0x60] sm:$0xff]
        %v670 = vld [vmem:[#allocation2 + $0x68] sm:$0xff]
        %v671 = vld [vmem:[#allocation2 + $0x78] sm:$0xff]
        %v672 = vld [vmem:[#allocation2 + $0x80] sm:$0xff]
        %v673 = vld [vmem:[#allocation2 + $0x90] sm:$0xff]
        %v674 = vld [vmem:[#allocation2 + $0x98] sm:$0xff]
        %v675 = vld [vmem:[#allocation2 + $0xa8] sm:$0xff]
        %v676 = vld [vmem:[#allocation2 + $0xb0] sm:$0xff]
        %v677 = vld [vmem:[#allocation2 + $0xc0] sm:$0xff]
        %v678 = vld [vmem:[#allocation2 + $0xc8] sm:$0xff]
        %v679 = vld [vmem:[#allocation2 + $0xd8] sm:$0xff]
        %v680 = vld [vmem:[#allocation2 + $0xe0] sm:$0xff]
        %v681 = vld [vmem:[#allocation2 + $0xf0] sm:$0xff]
        %v682 = vld [vmem:[#allocation2 + $0xf8] sm:$0xff]
        %v683 = vld [vmem:[#allocation2 + $0x108] sm:$0xff]
        %v684 = vld [vmem:[#allocation2 + $0x110] sm:$0xff]
        %v685 = vld [vmem:[#allocation2 + $0x120] sm:$0xff]
        %v686 = vld [vmem:[#allocation2 + $0x128] sm:$0xff]
        %v687 = vld [vmem:[#allocation2 + $0x138] sm:$0xff]
        %v688 = vld [vmem:[#allocation2 + $0x140] sm:$0xff]
        %v689 = vld [vmem:[#allocation2 + $0x150] sm:$0xff]
        %v690 = vld [vmem:[#allocation2 + $0x158] sm:$0xff]
        %v691 = vld [vmem:[#allocation2 + $0x168] sm:$0xff]
        %v692 = vld [vmem:[#allocation2 + $0x170] sm:$0xff]
        %693 = vmatprep.subr.mxu0 %v692
        %694 = vmatpush1.msra.mxu0 %v691
        %695 = vmatprep.subr.mxu0 %v690
        %696 = vmatpush1.msra.mxu0 %v689
        %697 = vmatprep.subr.mxu0 %v688
        %698 = vmatpush1.msra.mxu0 %v687
        %699 = vmatprep.subr.mxu0 %v686
        %700 = vmatpush1.msra.mxu0 %v685
        %701 = vmatprep.subr.mxu0 %v684
        %702 = vmatpush1.msra.mxu0 %v683
        %703 = vmatprep.subr.mxu0 %v682
        %704 = vmatpush1.msra.mxu0 %v681
        %705 = vmatprep.subr.mxu0 %v680
        %706 = vmatpush1.msra.mxu0 %v679
        %707 = vmatprep.subr.mxu0 %v678
        %708 = vmatpush1.msra.mxu0 %v677
        %709 = vmatprep.subr.mxu0 %v676
        %710 = vmatpush1.msra.mxu0 %v675
        %711 = vmatprep.subr.mxu0 %v674
        %712 = vmatpush1.msra.mxu0 %v673
        %713 = vmatprep.subr.mxu0 %v672
        %714 = vmatpush1.msra.mxu0 %v671
        %715 = vmatprep.subr.mxu0 %v670
        %716 = vmatpush1.msra.mxu0 %v669
        %717 = vmatprep.subr.mxu0 %v668
        %718 = vmatpush1.msra.mxu0 %v667
        %719 = vmatprep.subr.mxu0 %v666
        %720 = vmatpush1.msra.mxu0 %v665
        %721 = vmatprep.subr.mxu0 %v664
        %722 = vmatpush1.msra.mxu0 %v663
        %723 = vmatprep.subr.mxu0 %v662
        %724 = vmatpush1.msra.mxu0 %v661
        %725 = vmatprep.subr.mxu0 0.0
        %726 = vmatpush2.msra.mxu0 0.0
        %727 = vmatprep.subr.mxu0 0.0
        %728 = vmatpush2.msra.mxu0 0.0
        %729 = vmatprep.subr.mxu0 0.0
        %730 = vmatpush2.msra.mxu0 0.0
        %731 = vmatprep.subr.mxu0 0.0
        %732 = vmatpush2.msra.mxu0 0.0
        %733 = vmatprep.subr.mxu0 0.0
        %734 = vmatpush2.msra.mxu0 0.0
        %735 = vmatprep.subr.mxu0 0.0
        %736 = vmatpush2.msra.mxu0 0.0
        %737 = vmatprep.subr.mxu0 0.0
        %738 = vmatpush2.msra.mxu0 0.0
        %739 = vmatprep.subr.mxu0 0.0
        %740 = vmatpush2.msra.mxu0 0.0
        %741 = vmatprep.subr.mxu0 0.0
        %742 = vmatpush2.msra.mxu0 0.0
        %743 = vmatprep.subr.mxu0 0.0
        %744 = vmatpush2.msra.mxu0 0.0
        %745 = vmatprep.subr.mxu0 0.0
        %746 = vmatpush2.msra.mxu0 0.0
        %747 = vmatprep.subr.mxu0 0.0
        %748 = vmatpush2.msra.mxu0 0.0
        %749 = vmatprep.subr.mxu0 0.0
        %750 = vmatpush2.msra.mxu0 0.0
        %751 = vmatprep.subr.mxu0 0.0
        %752 = vmatpush2.msra.mxu0 0.0
        %753 = vmatprep.subr.mxu0 0.0
        %754 = vmatpush2.msra.mxu0 0.0
        %755 = vmatprep.subr.mxu0 0.0
        %756 = vmatpush2.msra.mxu0 0.0
        %757 = vmatprep.mubr.f32.mxu0 0.0
        %758 = vmatmul.mubr.f32.gmra.mxu0 %v533
        %v759 = vpop.f32.mrf.mxu0
        %v760 = vadd.f32 0.0, %v759
        %v761 = vpop.f32.mrf.mxu0
        %v762 = vadd.f32 0.0, %v761
        %763 = vmatprep.mubr.f32.mxu0 0.0
        %764 = vmatmul.mubr.f32.gmra.mxu0 %v534
        %v765 = vpop.f32.mrf.mxu0
        %v766 = vadd.f32 0.0, %v765
        %v767 = vpop.f32.mrf.mxu0
        %v768 = vadd.f32 0.0, %v767
        %769 = vmatprep.mubr.f32.mxu0 0.0
        %770 = vmatmul.mubr.f32.gmra.mxu0 %v535
        %v771 = vpop.f32.mrf.mxu0
        %v772 = vadd.f32 0.0, %v771
        %v773 = vpop.f32.mrf.mxu0
        %v774 = vadd.f32 0.0, %v773
        %775 = vmatprep.mubr.f32.mxu0 0.0
        %776 = vmatmul.mubr.f32.gmra.mxu0 %v536
        %v777 = vpop.f32.mrf.mxu0
        %v778 = vadd.f32 0.0, %v777
        %v779 = vpop.f32.mrf.mxu0
        %v780 = vadd.f32 0.0, %v779
        %781 = vmatprep.mubr.f32.mxu0 0.0
        %782 = vmatmul.mubr.f32.gmra.mxu0 %v537
        %v783 = vpop.f32.mrf.mxu0
        %v784 = vadd.f32 0.0, %v783
        %v785 = vpop.f32.mrf.mxu0
        %v786 = vadd.f32 0.0, %v785
        %787 = vmatprep.mubr.f32.mxu0 0.0
        %788 = vmatmul.mubr.f32.gmra.mxu0 %v538
        %v789 = vpop.f32.mrf.mxu0
        %v790 = vadd.f32 0.0, %v789
        %v791 = vpop.f32.mrf.mxu0
        %v792 = vadd.f32 0.0, %v791
        %793 = vmatprep.mubr.f32.mxu0 0.0
        %794 = vmatmul.mubr.f32.gmra.mxu0 %v539
        %v795 = vpop.f32.mrf.mxu0
        %v796 = vadd.f32 0.0, %v795
        %v797 = vpop.f32.mrf.mxu0
        %v798 = vadd.f32 0.0, %v797
        %799 = vmatprep.mubr.f32.mxu0 0.0
        %800 = vmatmul.mubr.f32.gmra.mxu0 %v540
        %v801 = vpop.f32.mrf.mxu0
        %v802 = vadd.f32 0.0, %v801
        %v803 = vpop.f32.mrf.mxu0
        %v804 = vadd.f32 0.0, %v803
        %805 = vmatprep.mubr.f32.mxu0 0.0
        %806 = vmatmul.mubr.f32.gmra.mxu0 %v541
        %v807 = vpop.f32.mrf.mxu0
        %v808 = vadd.f32 0.0, %v807
        %v809 = vpop.f32.mrf.mxu0
        %v810 = vadd.f32 0.0, %v809
        %811 = vmatprep.mubr.f32.mxu0 0.0
        %812 = vmatmul.mubr.f32.gmra.mxu0 %v542
        %v813 = vpop.f32.mrf.mxu0
        %v814 = vadd.f32 0.0, %v813
        %v815 = vpop.f32.mrf.mxu0
        %v816 = vadd.f32 0.0, %v815
        %817 = vmatprep.mubr.f32.mxu0 0.0
        %818 = vmatmul.mubr.f32.gmra.mxu0 %v543
        %v819 = vpop.f32.mrf.mxu0
        %v820 = vadd.f32 0.0, %v819
        %v821 = vpop.f32.mrf.mxu0
        %v822 = vadd.f32 0.0, %v821
        %823 = vmatprep.mubr.f32.mxu0 0.0
        %824 = vmatmul.mubr.f32.gmra.mxu0 %v544
        %v825 = vpop.f32.mrf.mxu0
        %v826 = vadd.f32 0.0, %v825
        %v827 = vpop.f32.mrf.mxu0
        %v828 = vadd.f32 0.0, %v827
        %829 = vmatprep.mubr.f32.mxu0 0.0
        %830 = vmatmul.mubr.f32.gmra.mxu0 %v545
        %v831 = vpop.f32.mrf.mxu0
        %v832 = vadd.f32 0.0, %v831
        %v833 = vpop.f32.mrf.mxu0
        %v834 = vadd.f32 0.0, %v833
        %835 = vmatprep.mubr.f32.mxu0 0.0
        %836 = vmatmul.mubr.f32.gmra.mxu0 %v546
        %v837 = vpop.f32.mrf.mxu0
        %v838 = vadd.f32 0.0, %v837
        %v839 = vpop.f32.mrf.mxu0
        %v840 = vadd.f32 0.0, %v839
        %841 = vmatprep.mubr.f32.mxu0 0.0
        %842 = vmatmul.mubr.f32.gmra.mxu0 %v547
        %v843 = vpop.f32.mrf.mxu0
        %v844 = vadd.f32 0.0, %v843
        %v845 = vpop.f32.mrf.mxu0
        %v846 = vadd.f32 0.0, %v845
        %847 = vmatprep.mubr.f32.mxu0 0.0
        %848 = vmatmul.mubr.f32.gmra.mxu0 %v548
        %v849 = vpop.f32.mrf.mxu0
        %v850 = vadd.f32 0.0, %v849
        %v851 = vpop.f32.mrf.mxu0
        %v852 = vadd.f32 0.0, %v851
        %853 = vdwg.mxu0
        %v854 = vld [vmem:[#allocation2 + $0x10] sm:$0xff]
        %v855 = vld [vmem:[#allocation2 + $0x28] sm:$0xff]
        %v856 = vld [vmem:[#allocation2 + $0x40] sm:$0xff]
        %v857 = vld [vmem:[#allocation2 + $0x58] sm:$0xff]
        %v858 = vld [vmem:[#allocation2 + $0x70] sm:$0xff]
        %v859 = vld [vmem:[#allocation2 + $0x88] sm:$0xff]
        %v860 = vld [vmem:[#allocation2 + $0xa0] sm:$0xff]
        %v861 = vld [vmem:[#allocation2 + $0xb8] sm:$0xff]
        %v862 = vld [vmem:[#allocation2 + $0xd0] sm:$0xff]
        %v863 = vld [vmem:[#allocation2 + $0xe8] sm:$0xff]
        %v864 = vld [vmem:[#allocation2 + $0x100] sm:$0xff]
        %v865 = vld [vmem:[#allocation2 + $0x118] sm:$0xff]
        %v866 = vld [vmem:[#allocation2 + $0x130] sm:$0xff]
        %v867 = vld [vmem:[#allocation2 + $0x148] sm:$0xff]
        %v868 = vld [vmem:[#allocation2 + $0x160] sm:$0xff]
        %v869 = vld [vmem:[#allocation2 + $0x178] sm:$0xff]
        %870 = vmatprep.subr.mxu0 0.0
        %871 = vmatpush1.msra.mxu0 %v869
        %872 = vmatprep.subr.mxu0 0.0
        %873 = vmatpush1.msra.mxu0 %v868
        %874 = vmatprep.subr.mxu0 0.0
        %875 = vmatpush1.msra.mxu0 %v867
        %876 = vmatprep.subr.mxu0 0.0
        %877 = vmatpush1.msra.mxu0 %v866
        %878 = vmatprep.subr.mxu0 0.0
        %879 = vmatpush1.msra.mxu0 %v865
        %880 = vmatprep.subr.mxu0 0.0
        %881 = vmatpush1.msra.mxu0 %v864
        %882 = vmatprep.subr.mxu0 0.0
        %883 = vmatpush1.msra.mxu0 %v863
        %884 = vmatprep.subr.mxu0 0.0
        %885 = vmatpush1.msra.mxu0 %v862
        %886 = vmatprep.subr.mxu0 0.0
        %887 = vmatpush1.msra.mxu0 %v861
        %888 = vmatprep.subr.mxu0 0.0
        %889 = vmatpush1.msra.mxu0 %v860
        %890 = vmatprep.subr.mxu0 0.0
        %891 = vmatpush1.msra.mxu0 %v859
        %892 = vmatprep.subr.mxu0 0.0
        %893 = vmatpush1.msra.mxu0 %v858
        %894 = vmatprep.subr.mxu0 0.0
        %895 = vmatpush1.msra.mxu0 %v857
        %896 = vmatprep.subr.mxu0 0.0
        %897 = vmatpush1.msra.mxu0 %v856
        %898 = vmatprep.subr.mxu0 0.0
        %899 = vmatpush1.msra.mxu0 %v855
        %900 = vmatprep.subr.mxu0 0.0
        %901 = vmatpush1.msra.mxu0 %v854
        %902 = vmatprep.subr.mxu0 0.0
        %903 = vmatpush2.msra.mxu0 0.0
        %904 = vmatprep.subr.mxu0 0.0
        %905 = vmatpush2.msra.mxu0 0.0
        %906 = vmatprep.subr.mxu0 0.0
        %907 = vmatpush2.msra.mxu0 0.0
        %908 = vmatprep.subr.mxu0 0.0
        %909 = vmatpush2.msra.mxu0 0.0
        %910 = vmatprep.subr.mxu0 0.0
        %911 = vmatpush2.msra.mxu0 0.0
        %912 = vmatprep.subr.mxu0 0.0
        %913 = vmatpush2.msra.mxu0 0.0
        %914 = vmatprep.subr.mxu0 0.0
        %915 = vmatpush2.msra.mxu0 0.0
        %916 = vmatprep.subr.mxu0 0.0
        %917 = vmatpush2.msra.mxu0 0.0
        %918 = vmatprep.subr.mxu0 0.0
        %919 = vmatpush2.msra.mxu0 0.0
        %920 = vmatprep.subr.mxu0 0.0
        %921 = vmatpush2.msra.mxu0 0.0
        %922 = vmatprep.subr.mxu0 0.0
        %923 = vmatpush2.msra.mxu0 0.0
        %924 = vmatprep.subr.mxu0 0.0
        %925 = vmatpush2.msra.mxu0 0.0
        %926 = vmatprep.subr.mxu0 0.0
        %927 = vmatpush2.msra.mxu0 0.0
        %928 = vmatprep.subr.mxu0 0.0
        %929 = vmatpush2.msra.mxu0 0.0
        %930 = vmatprep.subr.mxu0 0.0
        %931 = vmatpush2.msra.mxu0 0.0
        %932 = vmatprep.subr.mxu0 0.0
        %933 = vmatpush2.msra.mxu0 0.0
        %934 = vmatprep.mubr.f32.mxu0 0.0
        %935 = vmatmul.mubr.f32.gmra.mxu0 %v629
        %v936 = vpop.f32.mrf.mxu0
        %v937 = vadd.f32 0.0, %v936
        %v938 = vpop.f32.mrf.mxu0
        %939 = vmatprep.mubr.f32.mxu0 0.0
        %940 = vmatmul.mubr.f32.gmra.mxu0 %v630
        %v941 = vpop.f32.mrf.mxu0
        %v942 = vadd.f32 0.0, %v941
        %v943 = vpop.f32.mrf.mxu0
        %944 = vmatprep.mubr.f32.mxu0 0.0
        %945 = vmatmul.mubr.f32.gmra.mxu0 %v631
        %v946 = vpop.f32.mrf.mxu0
        %v947 = vadd.f32 0.0, %v946
        %v948 = vpop.f32.mrf.mxu0
        %949 = vmatprep.mubr.f32.mxu0 0.0
        %950 = vmatmul.mubr.f32.gmra.mxu0 %v632
        %v951 = vpop.f32.mrf.mxu0
        %v952 = vadd.f32 0.0, %v951
        %v953 = vpop.f32.mrf.mxu0
        %954 = vmatprep.mubr.f32.mxu0 0.0
        %955 = vmatmul.mubr.f32.gmra.mxu0 %v633
        %v956 = vpop.f32.mrf.mxu0
        %v957 = vadd.f32 0.0, %v956
        %v958 = vpop.f32.mrf.mxu0
        %959 = vmatprep.mubr.f32.mxu0 0.0
        %960 = vmatmul.mubr.f32.gmra.mxu0 %v634
        %v961 = vpop.f32.mrf.mxu0
        %v962 = vadd.f32 0.0, %v961
        %v963 = vpop.f32.mrf.mxu0
        %964 = vmatprep.mubr.f32.mxu0 0.0
        %965 = vmatmul.mubr.f32.gmra.mxu0 %v635
        %v966 = vpop.f32.mrf.mxu0
        %v967 = vadd.f32 0.0, %v966
        %v968 = vpop.f32.mrf.mxu0
        %969 = vmatprep.mubr.f32.mxu0 0.0
        %970 = vmatmul.mubr.f32.gmra.mxu0 %v636
        %v971 = vpop.f32.mrf.mxu0
        %v972 = vadd.f32 0.0, %v971
        %v973 = vpop.f32.mrf.mxu0
        %974 = vmatprep.mubr.f32.mxu0 0.0
        %975 = vmatmul.mubr.f32.gmra.mxu0 %v637
        %v976 = vpop.f32.mrf.mxu0
        %v977 = vadd.f32 0.0, %v976
        %v978 = vpop.f32.mrf.mxu0
        %979 = vmatprep.mubr.f32.mxu0 0.0
        %980 = vmatmul.mubr.f32.gmra.mxu0 %v638
        %v981 = vpop.f32.mrf.mxu0
        %v982 = vadd.f32 0.0, %v981
        %v983 = vpop.f32.mrf.mxu0
        %984 = vmatprep.mubr.f32.mxu0 0.0
        %985 = vmatmul.mubr.f32.gmra.mxu0 %v639
        %v986 = vpop.f32.mrf.mxu0
        %v987 = vadd.f32 0.0, %v986
        %v988 = vpop.f32.mrf.mxu0
        %989 = vmatprep.mubr.f32.mxu0 0.0
        %990 = vmatmul.mubr.f32.gmra.mxu0 %v640
        %v991 = vpop.f32.mrf.mxu0
        %v992 = vadd.f32 0.0, %v991
        %v993 = vpop.f32.mrf.mxu0
        %994 = vmatprep.mubr.f32.mxu0 0.0
        %995 = vmatmul.mubr.f32.gmra.mxu0 %v641
        %v996 = vpop.f32.mrf.mxu0
        %v997 = vadd.f32 0.0, %v996
        %v998 = vpop.f32.mrf.mxu0
        %999 = vmatprep.mubr.f32.mxu0 0.0
        %1000 = vmatmul.mubr.f32.gmra.mxu0 %v642
        %v1001 = vpop.f32.mrf.mxu0
        %v1002 = vadd.f32 0.0, %v1001
        %v1003 = vpop.f32.mrf.mxu0
        %1004 = vmatprep.mubr.f32.mxu0 0.0
        %1005 = vmatmul.mubr.f32.gmra.mxu0 %v643
        %v1006 = vpop.f32.mrf.mxu0
        %v1007 = vadd.f32 0.0, %v1006
        %v1008 = vpop.f32.mrf.mxu0
        %1009 = vmatprep.mubr.f32.mxu0 0.0
        %1010 = vmatmul.mubr.f32.gmra.mxu0 %v644
        %v1011 = vpop.f32.mrf.mxu0
        %v1012 = vadd.f32 0.0, %v1011
        %v1013 = vpop.f32.mrf.mxu0
        %1014 = vdwg.mxu0
        %v1015 = vadd.f32 %v760, %v937
        %v1016 = vadd.f32 %v766, %v942
        %v1017 = vadd.f32 %v772, %v947
        %v1018 = vadd.f32 %v778, %v952
        %v1019 = vadd.f32 %v784, %v957
        %v1020 = vadd.f32 %v790, %v962
        %v1021 = vadd.f32 %v796, %v967
        %v1022 = vadd.f32 %v802, %v972
        %v1023 = vadd.f32 %v808, %v977
        %v1024 = vadd.f32 %v814, %v982
        %v1025 = vadd.f32 %v820, %v987
        %v1026 = vadd.f32 %v826, %v992
        %v1027 = vadd.f32 %v832, %v997
        %v1028 = vadd.f32 %v838, %v1002
        %v1029 = vadd.f32 %v844, %v1007
        %v1030 = vadd.f32 %v850, %v1012
        %v1031 = vld [vmem:[#allocation5] sm:$0xff]
        %v1032 = vld [vmem:[#allocation5 + $0x8] sm:$0xff]
        %v1033 = vld [vmem:[#allocation5 + $0x10] sm:$0xff]
        %v1034 = vld [vmem:[#allocation5 + $0x18] sm:$0xff]
        %v1035 = vld [vmem:[#allocation5 + $0x20] sm:$0xff]
        %v1036 = vld [vmem:[#allocation5 + $0x28] sm:$0xff]
        %v1037 = vld [vmem:[#allocation5 + $0x30] sm:$0xff]
        %v1038 = vld [vmem:[#allocation5 + $0x38] sm:$0xff]
        %v1039 = vld [vmem:[#allocation5 + $0x40] sm:$0xff]
        %v1040 = vld [vmem:[#allocation5 + $0x48] sm:$0xff]
        %v1041 = vld [vmem:[#allocation5 + $0x50] sm:$0xff]
        %v1042 = vld [vmem:[#allocation5 + $0x58] sm:$0xff]
        %v1043 = vld [vmem:[#allocation5 + $0x60] sm:$0xff]
        %v1044 = vld [vmem:[#allocation5 + $0x68] sm:$0xff]
        %v1045 = vld [vmem:[#allocation5 + $0x70] sm:$0xff]
        %v1046 = vld [vmem:[#allocation5 + $0x78] sm:$0xff]
        %1047 = vmatprep.subr.mxu0 0.0
        %1048 = vmatpush1.msra.mxu0 %v1046
        %1049 = vmatprep.subr.mxu0 0.0
        %1050 = vmatpush1.msra.mxu0 %v1045
        %1051 = vmatprep.subr.mxu0 0.0
        %1052 = vmatpush1.msra.mxu0 %v1044
        %1053 = vmatprep.subr.mxu0 0.0
        %1054 = vmatpush1.msra.mxu0 %v1043
        %1055 = vmatprep.subr.mxu0 0.0
        %1056 = vmatpush1.msra.mxu0 %v1042
        %1057 = vmatprep.subr.mxu0 0.0
        %1058 = vmatpush1.msra.mxu0 %v1041
        %1059 = vmatprep.subr.mxu0 0.0
        %1060 = vmatpush1.msra.mxu0 %v1040
        %1061 = vmatprep.subr.mxu0 0.0
        %1062 = vmatpush1.msra.mxu0 %v1039
        %1063 = vmatprep.subr.mxu0 0.0
        %1064 = vmatpush1.msra.mxu0 %v1038
        %1065 = vmatprep.subr.mxu0 0.0
        %1066 = vmatpush1.msra.mxu0 %v1037
        %1067 = vmatprep.subr.mxu0 0.0
        %1068 = vmatpush1.msra.mxu0 %v1036
        %1069 = vmatprep.subr.mxu0 0.0
        %1070 = vmatpush1.msra.mxu0 %v1035
        %1071 = vmatprep.subr.mxu0 0.0
        %1072 = vmatpush1.msra.mxu0 %v1034
        %1073 = vmatprep.subr.mxu0 0.0
        %1074 = vmatpush1.msra.mxu0 %v1033
        %1075 = vmatprep.subr.mxu0 0.0
        %1076 = vmatpush1.msra.mxu0 %v1032
        %1077 = vmatprep.subr.mxu0 0.0
        %1078 = vmatpush1.msra.mxu0 %v1031
        %1079 = vmatprep.subr.mxu0 0.0
        %1080 = vmatpush2.msra.mxu0 0.0
        %1081 = vmatprep.subr.mxu0 0.0
        %1082 = vmatpush2.msra.mxu0 0.0
        %1083 = vmatprep.subr.mxu0 0.0
        %1084 = vmatpush2.msra.mxu0 0.0
        %1085 = vmatprep.subr.mxu0 0.0
        %1086 = vmatpush2.msra.mxu0 0.0
        %1087 = vmatprep.subr.mxu0 0.0
        %1088 = vmatpush2.msra.mxu0 0.0
        %1089 = vmatprep.subr.mxu0 0.0
        %1090 = vmatpush2.msra.mxu0 0.0
        %1091 = vmatprep.subr.mxu0 0.0
        %1092 = vmatpush2.msra.mxu0 0.0
        %1093 = vmatprep.subr.mxu0 0.0
        %1094 = vmatpush2.msra.mxu0 0.0
        %1095 = vmatprep.subr.mxu0 0.0
        %1096 = vmatpush2.msra.mxu0 0.0
        %1097 = vmatprep.subr.mxu0 0.0
        %1098 = vmatpush2.msra.mxu0 0.0
        %1099 = vmatprep.subr.mxu0 0.0
        %1100 = vmatpush2.msra.mxu0 0.0
        %1101 = vmatprep.subr.mxu0 0.0
        %1102 = vmatpush2.msra.mxu0 0.0
        %1103 = vmatprep.subr.mxu0 0.0
        %1104 = vmatpush2.msra.mxu0 0.0
        %1105 = vmatprep.subr.mxu0 0.0
        %1106 = vmatpush2.msra.mxu0 0.0
        %1107 = vmatprep.subr.mxu0 0.0
        %1108 = vmatpush2.msra.mxu0 0.0
        %1109 = vmatprep.subr.mxu0 0.0
        %1110 = vmatpush2.msra.mxu0 0.0
        %1111 = vmatprep.mubr.f32.mxu0 0.0
        %1112 = vmatmul.mubr.f32.gmra.mxu0 %v645
        %v1113 = vpop.f32.mrf.mxu0
        %v1114 = vadd.f32 0.0, %v1113
        %v1115 = vpop.f32.mrf.mxu0
        %1116 = vmatprep.mubr.f32.mxu0 0.0
        %1117 = vmatmul.mubr.f32.gmra.mxu0 %v646
        %v1118 = vpop.f32.mrf.mxu0
        %v1119 = vadd.f32 0.0, %v1118
        %v1120 = vpop.f32.mrf.mxu0
        %1121 = vmatprep.mubr.f32.mxu0 0.0
        %1122 = vmatmul.mubr.f32.gmra.mxu0 %v647
        %v1123 = vpop.f32.mrf.mxu0
        %v1124 = vadd.f32 0.0, %v1123
        %v1125 = vpop.f32.mrf.mxu0
        %1126 = vmatprep.mubr.f32.mxu0 0.0
        %1127 = vmatmul.mubr.f32.gmra.mxu0 %v648
        %v1128 = vpop.f32.mrf.mxu0
        %v1129 = vadd.f32 0.0, %v1128
        %v1130 = vpop.f32.mrf.mxu0
        %1131 = vmatprep.mubr.f32.mxu0 0.0
        %1132 = vmatmul.mubr.f32.gmra.mxu0 %v649
        %v1133 = vpop.f32.mrf.mxu0
        %v1134 = vadd.f32 0.0, %v1133
        %v1135 = vpop.f32.mrf.mxu0
        %1136 = vmatprep.mubr.f32.mxu0 0.0
        %1137 = vmatmul.mubr.f32.gmra.mxu0 %v650
        %v1138 = vpop.f32.mrf.mxu0
        %v1139 = vadd.f32 0.0, %v1138
        %v1140 = vpop.f32.mrf.mxu0
        %1141 = vmatprep.mubr.f32.mxu0 0.0
        %1142 = vmatmul.mubr.f32.gmra.mxu0 %v651
        %v1143 = vpop.f32.mrf.mxu0
        %v1144 = vadd.f32 0.0, %v1143
        %v1145 = vpop.f32.mrf.mxu0
        %1146 = vmatprep.mubr.f32.mxu0 0.0
        %1147 = vmatmul.mubr.f32.gmra.mxu0 %v652
        %v1148 = vpop.f32.mrf.mxu0
        %v1149 = vadd.f32 0.0, %v1148
        %v1150 = vpop.f32.mrf.mxu0
        %1151 = vmatprep.mubr.f32.mxu0 0.0
        %1152 = vmatmul.mubr.f32.gmra.mxu0 %v653
        %v1153 = vpop.f32.mrf.mxu0
        %v1154 = vadd.f32 0.0, %v1153
        %v1155 = vpop.f32.mrf.mxu0
        %1156 = vmatprep.mubr.f32.mxu0 0.0
        %1157 = vmatmul.mubr.f32.gmra.mxu0 %v654
        %v1158 = vpop.f32.mrf.mxu0
        %v1159 = vadd.f32 0.0, %v1158
        %v1160 = vpop.f32.mrf.mxu0
        %1161 = vmatprep.mubr.f32.mxu0 0.0
        %1162 = vmatmul.mubr.f32.gmra.mxu0 %v655
        %v1163 = vpop.f32.mrf.mxu0
        %v1164 = vadd.f32 0.0, %v1163
        %v1165 = vpop.f32.mrf.mxu0
        %1166 = vmatprep.mubr.f32.mxu0 0.0
        %1167 = vmatmul.mubr.f32.gmra.mxu0 %v656
        %v1168 = vpop.f32.mrf.mxu0
        %v1169 = vadd.f32 0.0, %v1168
        %v1170 = vpop.f32.mrf.mxu0
        %1171 = vmatprep.mubr.f32.mxu0 0.0
        %1172 = vmatmul.mubr.f32.gmra.mxu0 %v657
        %v1173 = vpop.f32.mrf.mxu0
        %v1174 = vadd.f32 0.0, %v1173
        %v1175 = vpop.f32.mrf.mxu0
        %1176 = vmatprep.mubr.f32.mxu0 0.0
        %1177 = vmatmul.mubr.f32.gmra.mxu0 %v658
        %v1178 = vpop.f32.mrf.mxu0
        %v1179 = vadd.f32 0.0, %v1178
        %v1180 = vpop.f32.mrf.mxu0
        %1181 = vmatprep.mubr.f32.mxu0 0.0
        %1182 = vmatmul.mubr.f32.gmra.mxu0 %v659
        %v1183 = vpop.f32.mrf.mxu0
        %v1184 = vadd.f32 0.0, %v1183
        %v1185 = vpop.f32.mrf.mxu0
        %1186 = vmatprep.mubr.f32.mxu0 0.0
        %1187 = vmatmul.mubr.f32.gmra.mxu0 %v660
        %v1188 = vpop.f32.mrf.mxu0
        %v1189 = vadd.f32 0.0, %v1188
        %v1190 = vpop.f32.mrf.mxu0
        %1191 = vdwg.mxu0
        %v1192 = vadd.f32 %v1015, %v1114
        %v1193 = vadd.f32 %v1016, %v1119
        %v1194 = vadd.f32 %v1017, %v1124
        %v1195 = vadd.f32 %v1018, %v1129
        %v1196 = vadd.f32 %v1019, %v1134
        %v1197 = vadd.f32 %v1020, %v1139
        %v1198 = vadd.f32 %v1021, %v1144
        %v1199 = vadd.f32 %v1022, %v1149
        %v1200 = vadd.f32 %v1023, %v1154
        %v1201 = vadd.f32 %v1024, %v1159
        %v1202 = vadd.f32 %v1025, %v1164
        %v1203 = vadd.f32 %v1026, %v1169
        %v1204 = vadd.f32 %v1027, %v1174
        %v1205 = vadd.f32 %v1028, %v1179
        %v1206 = vadd.f32 %v1029, %v1184
        %v1207 = vadd.f32 %v1030, %v1189
        %v1208 = vld [vmem:[%s4] sm:$0x1]
        %v1210 = vlaneseq
        %v1211 = vshrl.u32 %v1210, 7
        %v1212 = vsub.s32 0, %v1211
        %v1213 = vrot.slane %v1208, %v1212
        %v1215 = vadd.f32 %v1192, %v1213
        %v1216 = vadd.f32 %v1193, %v1213
        %v1217 = vadd.f32 %v1194, %v1213
        %v1218 = vadd.f32 %v1195, %v1213
        %v1219 = vadd.f32 %v1196, %v1213
        %v1220 = vadd.f32 %v1197, %v1213
        %v1221 = vadd.f32 %v1198, %v1213
        %v1222 = vadd.f32 %v1199, %v1213
        %v1223 = vadd.f32 %v1200, %v1213
        %v1224 = vadd.f32 %v1201, %v1213
        %v1225 = vadd.f32 %v1202, %v1213
        %v1226 = vadd.f32 %v1203, %v1213
        %v1227 = vadd.f32 %v1204, %v1213
        %v1228 = vadd.f32 %v1205, %v1213
        %v1229 = vadd.f32 %v1206, %v1213
        %v1230 = vadd.f32 %v1207, %v1213
        %v1231 = vxor.u32 %v1215, 2147483648
        %v1232 = vxor.u32 %v1216, 2147483648
        %v1233 = vxor.u32 %v1217, 2147483648
        %v1234 = vxor.u32 %v1218, 2147483648
        %v1235 = vxor.u32 %v1219, 2147483648
        %v1236 = vxor.u32 %v1220, 2147483648
        %v1237 = vxor.u32 %v1221, 2147483648
        %v1238 = vxor.u32 %v1222, 2147483648
        %v1239 = vxor.u32 %v1223, 2147483648
        %v1240 = vxor.u32 %v1224, 2147483648
        %v1241 = vxor.u32 %v1225, 2147483648
        %v1242 = vxor.u32 %v1226, 2147483648
        %v1243 = vxor.u32 %v1227, 2147483648
        %v1244 = vxor.u32 %v1228, 2147483648
        %v1245 = vxor.u32 %v1229, 2147483648
        %v1246 = vxor.u32 %v1230, 2147483648
        %v1247 = vmul.f32 %v1231, 1.442695
        %v1248 = vpow.pop %v1247
        %v1249 = vmul.f32 %v1232, 1.442695
        %v1250 = vpow.pop %v1249
        %v1251 = vmul.f32 %v1233, 1.442695
        %v1252 = vpow.pop %v1251
        %v1253 = vmul.f32 %v1234, 1.442695
        %v1254 = vpow.pop %v1253
        %v1255 = vmul.f32 %v1235, 1.442695
        %v1256 = vpow.pop %v1255
        %v1257 = vmul.f32 %v1236, 1.442695
        %v1258 = vpow.pop %v1257
        %v1259 = vmul.f32 %v1237, 1.442695
        %v1260 = vpow.pop %v1259
        %v1261 = vmul.f32 %v1238, 1.442695
        %v1262 = vpow.pop %v1261
        %v1263 = vmul.f32 %v1239, 1.442695
        %v1264 = vpow.pop %v1263
        %v1265 = vmul.f32 %v1240, 1.442695
        %v1266 = vpow.pop %v1265
        %v1267 = vmul.f32 %v1241, 1.442695
        %v1268 = vpow.pop %v1267
        %v1269 = vmul.f32 %v1242, 1.442695
        %v1270 = vpow.pop %v1269
        %v1271 = vmul.f32 %v1243, 1.442695
        %v1272 = vpow.pop %v1271
        %v1273 = vmul.f32 %v1244, 1.442695
        %v1274 = vpow.pop %v1273
        %v1275 = vmul.f32 %v1245, 1.442695
        %v1276 = vpow.pop %v1275
        %v1277 = vmul.f32 %v1246, 1.442695
        %v1278 = vpow.pop %v1277
        %v1279 = vadd.f32 %v1248, 1.0
        %v1280 = vadd.f32 %v1250, 1.0
        %v1281 = vadd.f32 %v1252, 1.0
        %v1282 = vadd.f32 %v1254, 1.0
        %v1283 = vadd.f32 %v1256, 1.0
        %v1284 = vadd.f32 %v1258, 1.0
        %v1285 = vadd.f32 %v1260, 1.0
        %v1286 = vadd.f32 %v1262, 1.0
        %v1287 = vadd.f32 %v1264, 1.0
        %v1288 = vadd.f32 %v1266, 1.0
        %v1289 = vadd.f32 %v1268, 1.0
        %v1290 = vadd.f32 %v1270, 1.0
        %v1291 = vadd.f32 %v1272, 1.0
        %v1292 = vadd.f32 %v1274, 1.0
        %v1293 = vadd.f32 %v1276, 1.0
        %v1294 = vadd.f32 %v1278, 1.0
        %v1295 = vrcp.pop %v1279
        %v1296 = vmul.f32 1.0, %v1295
        %v1297 = vrcp.pop %v1280
        %v1298 = vmul.f32 1.0, %v1297
        %v1299 = vrcp.pop %v1281
        %v1300 = vmul.f32 1.0, %v1299
        %v1301 = vrcp.pop %v1282
        %v1302 = vmul.f32 1.0, %v1301
        %v1303 = vrcp.pop %v1283
        %v1304 = vmul.f32 1.0, %v1303
        %v1305 = vrcp.pop %v1284
        %v1306 = vmul.f32 1.0, %v1305
        %v1307 = vrcp.pop %v1285
        %v1308 = vmul.f32 1.0, %v1307
        %v1309 = vrcp.pop %v1286
        %v1310 = vmul.f32 1.0, %v1309
        %v1311 = vrcp.pop %v1287
        %v1312 = vmul.f32 1.0, %v1311
        %v1313 = vrcp.pop %v1288
        %v1314 = vmul.f32 1.0, %v1313
        %v1315 = vrcp.pop %v1289
        %v1316 = vmul.f32 1.0, %v1315
        %v1317 = vrcp.pop %v1290
        %v1318 = vmul.f32 1.0, %v1317
        %v1319 = vrcp.pop %v1291
        %v1320 = vmul.f32 1.0, %v1319
        %v1321 = vrcp.pop %v1292
        %v1322 = vmul.f32 1.0, %v1321
        %v1323 = vrcp.pop %v1293
        %v1324 = vmul.f32 1.0, %v1323
        %v1325 = vrcp.pop %v1294
        %v1326 = vmul.f32 1.0, %v1325
        %v1327 = vmul.f32 %v762, %v1296
        %v1328 = vmul.f32 %v768, %v1298
        %v1329 = vmul.f32 %v774, %v1300
        %v1330 = vmul.f32 %v780, %v1302
        %v1331 = vmul.f32 %v786, %v1304
        %v1332 = vmul.f32 %v792, %v1306
        %v1333 = vmul.f32 %v798, %v1308
        %v1334 = vmul.f32 %v804, %v1310
        %v1335 = vmul.f32 %v810, %v1312
        %v1336 = vmul.f32 %v816, %v1314
        %v1337 = vmul.f32 %v822, %v1316
        %v1338 = vmul.f32 %v828, %v1318
        %v1339 = vmul.f32 %v834, %v1320
        %v1340 = vmul.f32 %v840, %v1322
        %v1341 = vmul.f32 %v846, %v1324
        %v1342 = vmul.f32 %v852, %v1326
        %1343 = vxpose.xlu0.b32.start [1/16] %v629, 128
        %1344 = vxpose.xlu0.b32.cont [2/16] %v630, 128
        %1345 = vxpose.xlu0.b32.cont [3/16] %v631, 128
        %1346 = vxpose.xlu0.b32.cont [4/16] %v632, 128
        %1347 = vxpose.xlu0.b32.cont [5/16] %v633, 128
        %1348 = vxpose.xlu0.b32.cont [6/16] %v634, 128
        %1349 = vxpose.xlu0.b32.cont [7/16] %v635, 128
        %1350 = vxpose.xlu0.b32.cont [8/16] %v636, 128
        %1351 = vxpose.xlu0.b32.cont [9/16] %v637, 128
        %1352 = vxpose.xlu0.b32.cont [10/16] %v638, 128
        %1353 = vxpose.xlu0.b32.cont [11/16] %v639, 128
        %1354 = vxpose.xlu0.b32.cont [12/16] %v640, 128
        %1355 = vxpose.xlu0.b32.cont [13/16] %v641, 128
        %1356 = vxpose.xlu0.b32.cont [14/16] %v642, 128
        %1357 = vxpose.xlu0.b32.cont [15/16] %v643, 128
        %1358 = vxpose.xlu0.b32.end [16/16] %v644, 128
        %v1359 = vpop.trf.xlu0
        %v1360 = vpop.trf.xlu0
        %v1361 = vpop.trf.xlu0
        %v1362 = vpop.trf.xlu0
        %v1363 = vpop.trf.xlu0
        %v1364 = vpop.trf.xlu0
        %v1365 = vpop.trf.xlu0
        %v1366 = vpop.trf.xlu0
        %v1367 = vpop.trf.xlu0
        %v1368 = vpop.trf.xlu0
        %v1369 = vpop.trf.xlu0
        %v1370 = vpop.trf.xlu0
        %v1371 = vpop.trf.xlu0
        %v1372 = vpop.trf.xlu0
        %v1373 = vpop.trf.xlu0
        %v1374 = vpop.trf.xlu0
        %1375 = vmatprep.subr.mxu0 %v1326
        %1376 = vmatpush1.msra.mxu0 %v1342
        %1377 = vmatprep.subr.mxu0 %v1324
        %1378 = vmatpush1.msra.mxu0 %v1341
        %1379 = vmatprep.subr.mxu0 %v1322
        %1380 = vmatpush1.msra.mxu0 %v1340
        %1381 = vmatprep.subr.mxu0 %v1320
        %1382 = vmatpush1.msra.mxu0 %v1339
        %1383 = vmatprep.subr.mxu0 %v1318
        %1384 = vmatpush1.msra.mxu0 %v1338
        %1385 = vmatprep.subr.mxu0 %v1316
        %1386 = vmatpush1.msra.mxu0 %v1337
        %1387 = vmatprep.subr.mxu0 %v1314
        %1388 = vmatpush1.msra.mxu0 %v1336
        %1389 = vmatprep.subr.mxu0 %v1312
        %1390 = vmatpush1.msra.mxu0 %v1335
        %1391 = vmatprep.subr.mxu0 %v1310
        %1392 = vmatpush1.msra.mxu0 %v1334
        %1393 = vmatprep.subr.mxu0 %v1308
        %1394 = vmatpush1.msra.mxu0 %v1333
        %1395 = vmatprep.subr.mxu0 %v1306
        %1396 = vmatpush1.msra.mxu0 %v1332
        %1397 = vmatprep.subr.mxu0 %v1304
        %1398 = vmatpush1.msra.mxu0 %v1331
        %1399 = vmatprep.subr.mxu0 %v1302
        %1400 = vmatpush1.msra.mxu0 %v1330
        %1401 = vmatprep.subr.mxu0 %v1300
        %1402 = vmatpush1.msra.mxu0 %v1329
        %1403 = vmatprep.subr.mxu0 %v1298
        %1404 = vmatpush1.msra.mxu0 %v1328
        %1405 = vmatprep.subr.mxu0 %v1296
        %1406 = vmatpush1.msra.mxu0 %v1327
        %1407 = vmatprep.subr.mxu0 0.0
        %1408 = vmatpush2.msra.mxu0 0.0
        %1409 = vmatprep.subr.mxu0 0.0
        %1410 = vmatpush2.msra.mxu0 0.0
        %1411 = vmatprep.subr.mxu0 0.0
        %1412 = vmatpush2.msra.mxu0 0.0
        %1413 = vmatprep.subr.mxu0 0.0
        %1414 = vmatpush2.msra.mxu0 0.0
        %1415 = vmatprep.subr.mxu0 0.0
        %1416 = vmatpush2.msra.mxu0 0.0
        %1417 = vmatprep.subr.mxu0 0.0
        %1418 = vmatpush2.msra.mxu0 0.0
        %1419 = vmatprep.subr.mxu0 0.0
        %1420 = vmatpush2.msra.mxu0 0.0
        %1421 = vmatprep.subr.mxu0 0.0
        %1422 = vmatpush2.msra.mxu0 0.0
        %1423 = vmatprep.subr.mxu0 0.0
        %1424 = vmatpush2.msra.mxu0 0.0
        %1425 = vmatprep.subr.mxu0 0.0
        %1426 = vmatpush2.msra.mxu0 0.0
        %1427 = vmatprep.subr.mxu0 0.0
        %1428 = vmatpush2.msra.mxu0 0.0
        %1429 = vmatprep.subr.mxu0 0.0
        %1430 = vmatpush2.msra.mxu0 0.0
        %1431 = vmatprep.subr.mxu0 0.0
        %1432 = vmatpush2.msra.mxu0 0.0
        %1433 = vmatprep.subr.mxu0 0.0
        %1434 = vmatpush2.msra.mxu0 0.0
        %1435 = vmatprep.subr.mxu0 0.0
        %1436 = vmatpush2.msra.mxu0 0.0
        %1437 = vmatprep.subr.mxu0 0.0
        %1438 = vmatpush2.msra.mxu0 0.0
        %1439 = vmatprep.mubr.f32.mxu0 0.0
        %1440 = vmatmul.mubr.f32.gmra.mxu0 %v1359
        %v1441 = vpop.f32.mrf.mxu0
        %v1442 = vadd.f32 0.0, %v1441
        %v1443 = vpop.f32.mrf.mxu0
        %v1444 = vadd.f32 0.0, %v1443
        %1445 = vmatprep.mubr.f32.mxu0 0.0
        %1446 = vmatmul.mubr.f32.gmra.mxu0 %v1360
        %v1447 = vpop.f32.mrf.mxu0
        %v1448 = vadd.f32 0.0, %v1447
        %v1449 = vpop.f32.mrf.mxu0
        %v1450 = vadd.f32 0.0, %v1449
        %1451 = vmatprep.mubr.f32.mxu0 0.0
        %1452 = vmatmul.mubr.f32.gmra.mxu0 %v1361
        %v1453 = vpop.f32.mrf.mxu0
        %v1454 = vadd.f32 0.0, %v1453
        %v1455 = vpop.f32.mrf.mxu0
        %v1456 = vadd.f32 0.0, %v1455
        %1457 = vmatprep.mubr.f32.mxu0 0.0
        %1458 = vmatmul.mubr.f32.gmra.mxu0 %v1362
        %v1459 = vpop.f32.mrf.mxu0
        %v1460 = vadd.f32 0.0, %v1459
        %v1461 = vpop.f32.mrf.mxu0
        %v1462 = vadd.f32 0.0, %v1461
        %1463 = vmatprep.mubr.f32.mxu0 0.0
        %1464 = vmatmul.mubr.f32.gmra.mxu0 %v1363
        %v1465 = vpop.f32.mrf.mxu0
        %v1466 = vadd.f32 0.0, %v1465
        %v1467 = vpop.f32.mrf.mxu0
        %v1468 = vadd.f32 0.0, %v1467
        %1469 = vmatprep.mubr.f32.mxu0 0.0
        %1470 = vmatmul.mubr.f32.gmra.mxu0 %v1364
        %v1471 = vpop.f32.mrf.mxu0
        %v1472 = vadd.f32 0.0, %v1471
        %v1473 = vpop.f32.mrf.mxu0
        %v1474 = vadd.f32 0.0, %v1473
        %1475 = vmatprep.mubr.f32.mxu0 0.0
        %1476 = vmatmul.mubr.f32.gmra.mxu0 %v1365
        %v1477 = vpop.f32.mrf.mxu0
        %v1478 = vadd.f32 0.0, %v1477
        %v1479 = vpop.f32.mrf.mxu0
        %v1480 = vadd.f32 0.0, %v1479
        %1481 = vmatprep.mubr.f32.mxu0 0.0
        %1482 = vmatmul.mubr.f32.gmra.mxu0 %v1366
        %v1483 = vpop.f32.mrf.mxu0
        %v1484 = vadd.f32 0.0, %v1483
        %v1485 = vpop.f32.mrf.mxu0
        %v1486 = vadd.f32 0.0, %v1485
        %1487 = vmatprep.mubr.f32.mxu0 0.0
        %1488 = vmatmul.mubr.f32.gmra.mxu0 %v1367
        %v1489 = vpop.f32.mrf.mxu0
        %v1490 = vadd.f32 0.0, %v1489
        %v1491 = vpop.f32.mrf.mxu0
        %v1492 = vadd.f32 0.0, %v1491
        %1493 = vmatprep.mubr.f32.mxu0 0.0
        %1494 = vmatmul.mubr.f32.gmra.mxu0 %v1368
        %v1495 = vpop.f32.mrf.mxu0
        %v1496 = vadd.f32 0.0, %v1495
        %v1497 = vpop.f32.mrf.mxu0
        %v1498 = vadd.f32 0.0, %v1497
        %1499 = vmatprep.mubr.f32.mxu0 0.0
        %1500 = vmatmul.mubr.f32.gmra.mxu0 %v1369
        %v1501 = vpop.f32.mrf.mxu0
        %v1502 = vadd.f32 0.0, %v1501
        %v1503 = vpop.f32.mrf.mxu0
        %v1504 = vadd.f32 0.0, %v1503
        %1505 = vmatprep.mubr.f32.mxu0 0.0
        %1506 = vmatmul.mubr.f32.gmra.mxu0 %v1370
        %v1507 = vpop.f32.mrf.mxu0
        %v1508 = vadd.f32 0.0, %v1507
        %v1509 = vpop.f32.mrf.mxu0
        %v1510 = vadd.f32 0.0, %v1509
        %1511 = vmatprep.mubr.f32.mxu0 0.0
        %1512 = vmatmul.mubr.f32.gmra.mxu0 %v1371
        %v1513 = vpop.f32.mrf.mxu0
        %v1514 = vadd.f32 0.0, %v1513
        %v1515 = vpop.f32.mrf.mxu0
        %v1516 = vadd.f32 0.0, %v1515
        %1517 = vmatprep.mubr.f32.mxu0 0.0
        %1518 = vmatmul.mubr.f32.gmra.mxu0 %v1372
        %v1519 = vpop.f32.mrf.mxu0
        %v1520 = vadd.f32 0.0, %v1519
        %v1521 = vpop.f32.mrf.mxu0
        %v1522 = vadd.f32 0.0, %v1521
        %1523 = vmatprep.mubr.f32.mxu0 0.0
        %1524 = vmatmul.mubr.f32.gmra.mxu0 %v1373
        %v1525 = vpop.f32.mrf.mxu0
        %v1526 = vadd.f32 0.0, %v1525
        %v1527 = vpop.f32.mrf.mxu0
        %v1528 = vadd.f32 0.0, %v1527
        %1529 = vmatprep.mubr.f32.mxu0 0.0
        %1530 = vmatmul.mubr.f32.gmra.mxu0 %v1374
        %v1531 = vpop.f32.mrf.mxu0
        %v1532 = vadd.f32 0.0, %v1531
        %v1533 = vpop.f32.mrf.mxu0
        %v1534 = vadd.f32 0.0, %v1533
        %1535 = vdwg.mxu0
        %v1536 = vld [vmem:[%s373] sm:$0xff]
        %v1537 = vld [vmem:[%s373 + $0x8] sm:$0xff]
        %v1538 = vld [vmem:[%s373 + $0x10] sm:$0xff]
        %v1539 = vld [vmem:[%s373 + $0x18] sm:$0xff]
        %v1540 = vld [vmem:[%s373 + $0x20] sm:$0xff]
        %v1541 = vld [vmem:[%s373 + $0x28] sm:$0xff]
        %v1542 = vld [vmem:[%s373 + $0x30] sm:$0xff]
        %v1543 = vld [vmem:[%s373 + $0x38] sm:$0xff]
        %v1544 = vld [vmem:[%s373 + $0x40] sm:$0xff]
        %v1545 = vld [vmem:[%s373 + $0x48] sm:$0xff]
        %v1546 = vld [vmem:[%s373 + $0x50] sm:$0xff]
        %v1547 = vld [vmem:[%s373 + $0x58] sm:$0xff]
        %v1548 = vld [vmem:[%s373 + $0x60] sm:$0xff]
        %v1549 = vld [vmem:[%s373 + $0x68] sm:$0xff]
        %v1550 = vld [vmem:[%s373 + $0x70] sm:$0xff]
        %v1551 = vld [vmem:[%s373 + $0x78] sm:$0xff]
        %v1552 = vld [vmem:[%s373 + $0x80] sm:$0xff]
        %v1553 = vld [vmem:[%s373 + $0x88] sm:$0xff]
        %v1554 = vld [vmem:[%s373 + $0x90] sm:$0xff]
        %v1555 = vld [vmem:[%s373 + $0x98] sm:$0xff]
        %v1556 = vld [vmem:[%s373 + $0xa0] sm:$0xff]
        %v1557 = vld [vmem:[%s373 + $0xa8] sm:$0xff]
        %v1558 = vld [vmem:[%s373 + $0xb0] sm:$0xff]
        %v1559 = vld [vmem:[%s373 + $0xb8] sm:$0xff]
        %v1560 = vld [vmem:[%s373 + $0xc0] sm:$0xff]
        %v1561 = vld [vmem:[%s373 + $0xc8] sm:$0xff]
        %v1562 = vld [vmem:[%s373 + $0xd0] sm:$0xff]
        %v1563 = vld [vmem:[%s373 + $0xd8] sm:$0xff]
        %v1564 = vld [vmem:[%s373 + $0xe0] sm:$0xff]
        %v1565 = vld [vmem:[%s373 + $0xe8] sm:$0xff]
        %v1566 = vld [vmem:[%s373 + $0xf0] sm:$0xff]
        %v1567 = vld [vmem:[%s373 + $0xf8] sm:$0xff]
        %v1568 = vadd.f32 %v1536, %v1442
        %v1569 = vadd.f32 %v1537, %v1444
        %v1570 = vadd.f32 %v1538, %v1448
        %v1571 = vadd.f32 %v1539, %v1450
        %v1572 = vadd.f32 %v1540, %v1454
        %v1573 = vadd.f32 %v1541, %v1456
        %v1574 = vadd.f32 %v1542, %v1460
        %v1575 = vadd.f32 %v1543, %v1462
        %v1576 = vadd.f32 %v1544, %v1466
        %v1577 = vadd.f32 %v1545, %v1468
        %v1578 = vadd.f32 %v1546, %v1472
        %v1579 = vadd.f32 %v1547, %v1474
        %v1580 = vadd.f32 %v1548, %v1478
        %v1581 = vadd.f32 %v1549, %v1480
        %v1582 = vadd.f32 %v1550, %v1484
        %v1583 = vadd.f32 %v1551, %v1486
        %v1584 = vadd.f32 %v1552, %v1490
        %v1585 = vadd.f32 %v1553, %v1492
        %v1586 = vadd.f32 %v1554, %v1496
        %v1587 = vadd.f32 %v1555, %v1498
        %v1588 = vadd.f32 %v1556, %v1502
        %v1589 = vadd.f32 %v1557, %v1504
        %v1590 = vadd.f32 %v1558, %v1508
        %v1591 = vadd.f32 %v1559, %v1510
        %v1592 = vadd.f32 %v1560, %v1514
        %v1593 = vadd.f32 %v1561, %v1516
        %v1594 = vadd.f32 %v1562, %v1520
        %v1595 = vadd.f32 %v1563, %v1522
        %v1596 = vadd.f32 %v1564, %v1526
        %v1597 = vadd.f32 %v1565, %v1528
        %v1598 = vadd.f32 %v1566, %v1532
        %v1599 = vadd.f32 %v1567, %v1534
        %1600 = vst [vmem:[%s373] sm:$0xff] %v1568
        %1601 = vst [vmem:[%s373 + $0x8] sm:$0xff] %v1569
        %1602 = vst [vmem:[%s373 + $0x10] sm:$0xff] %v1570
        %1603 = vst [vmem:[%s373 + $0x18] sm:$0xff] %v1571
        %1604 = vst [vmem:[%s373 + $0x20] sm:$0xff] %v1572
        %1605 = vst [vmem:[%s373 + $0x28] sm:$0xff] %v1573
        %1606 = vst [vmem:[%s373 + $0x30] sm:$0xff] %v1574
        %1607 = vst [vmem:[%s373 + $0x38] sm:$0xff] %v1575
        %1608 = vst [vmem:[%s373 + $0x40] sm:$0xff] %v1576
        %1609 = vst [vmem:[%s373 + $0x48] sm:$0xff] %v1577
        %1610 = vst [vmem:[%s373 + $0x50] sm:$0xff] %v1578
        %1611 = vst [vmem:[%s373 + $0x58] sm:$0xff] %v1579
        %1612 = vst [vmem:[%s373 + $0x60] sm:$0xff] %v1580
        %1613 = vst [vmem:[%s373 + $0x68] sm:$0xff] %v1581
        %1614 = vst [vmem:[%s373 + $0x70] sm:$0xff] %v1582
        %1615 = vst [vmem:[%s373 + $0x78] sm:$0xff] %v1583
        %1616 = vst [vmem:[%s373 + $0x80] sm:$0xff] %v1584
        %1617 = vst [vmem:[%s373 + $0x88] sm:$0xff] %v1585
        %1618 = vst [vmem:[%s373 + $0x90] sm:$0xff] %v1586
        %1619 = vst [vmem:[%s373 + $0x98] sm:$0xff] %v1587
        %1620 = vst [vmem:[%s373 + $0xa0] sm:$0xff] %v1588
        %1621 = vst [vmem:[%s373 + $0xa8] sm:$0xff] %v1589
        %1622 = vst [vmem:[%s373 + $0xb0] sm:$0xff] %v1590
        %1623 = vst [vmem:[%s373 + $0xb8] sm:$0xff] %v1591
        %1624 = vst [vmem:[%s373 + $0xc0] sm:$0xff] %v1592
        %1625 = vst [vmem:[%s373 + $0xc8] sm:$0xff] %v1593
        %1626 = vst [vmem:[%s373 + $0xd0] sm:$0xff] %v1594
        %1627 = vst [vmem:[%s373 + $0xd8] sm:$0xff] %v1595
        %1628 = vst [vmem:[%s373 + $0xe0] sm:$0xff] %v1596
        %1629 = vst [vmem:[%s373 + $0xe8] sm:$0xff] %v1597
        %1630 = vst [vmem:[%s373 + $0xf0] sm:$0xff] %v1598
        %1631 = vst [vmem:[%s373 + $0xf8] sm:$0xff] %v1599
        %v1632 = vld [vmem:[%s5] sm:$0x1]
        %v1633 = vld [vmem:[%s6] sm:$0x1]
        %1634 = vadd.xlane.f32.xlu0 %v1215
        %v1635 = vpop.xlane.xlu0 %1634
        %1636 = vadd.xlane.f32.xlu0 %v1216
        %v1637 = vpop.xlane.xlu0 %1636
        %1638 = vadd.xlane.f32.xlu0 %v1217
        %v1639 = vpop.xlane.xlu0 %1638
        %1640 = vadd.xlane.f32.xlu0 %v1218
        %v1641 = vpop.xlane.xlu0 %1640
        %1642 = vadd.xlane.f32.xlu0 %v1219
        %v1643 = vpop.xlane.xlu0 %1642
        %1644 = vadd.xlane.f32.xlu0 %v1220
        %v1645 = vpop.xlane.xlu0 %1644
        %1646 = vadd.xlane.f32.xlu0 %v1221
        %v1647 = vpop.xlane.xlu0 %1646
        %1648 = vadd.xlane.f32.xlu0 %v1222
        %v1649 = vpop.xlane.xlu0 %1648
        %1650 = vadd.xlane.f32.xlu0 %v1223
        %v1651 = vpop.xlane.xlu0 %1650
        %1652 = vadd.xlane.f32.xlu0 %v1224
        %v1653 = vpop.xlane.xlu0 %1652
        %1654 = vadd.xlane.f32.xlu0 %v1225
        %v1655 = vpop.xlane.xlu0 %1654
        %1656 = vadd.xlane.f32.xlu0 %v1226
        %v1657 = vpop.xlane.xlu0 %1656
        %1658 = vadd.xlane.f32.xlu0 %v1227
        %v1659 = vpop.xlane.xlu0 %1658
        %1660 = vadd.xlane.f32.xlu0 %v1228
        %v1661 = vpop.xlane.xlu0 %1660
        %1662 = vadd.xlane.f32.xlu0 %v1229
        %v1663 = vpop.xlane.xlu0 %1662
        %1664 = vadd.xlane.f32.xlu0 %v1230
        %v1665 = vpop.xlane.xlu0 %1664
        %v1666 = vrcp.pop 128.0
        %v1667 = vmul.f32 %v1635, %v1666
        %v1668 = vmul.f32 %v1637, %v1666
        %v1669 = vmul.f32 %v1639, %v1666
        %v1670 = vmul.f32 %v1641, %v1666
        %v1671 = vmul.f32 %v1643, %v1666
        %v1672 = vmul.f32 %v1645, %v1666
        %v1673 = vmul.f32 %v1647, %v1666
        %v1674 = vmul.f32 %v1649, %v1666
        %v1675 = vmul.f32 %v1651, %v1666
        %v1676 = vmul.f32 %v1653, %v1666
        %v1677 = vmul.f32 %v1655, %v1666
        %v1678 = vmul.f32 %v1657, %v1666
        %v1679 = vmul.f32 %v1659, %v1666
        %v1680 = vmul.f32 %v1661, %v1666
        %v1681 = vmul.f32 %v1663, %v1666
        %v1682 = vmul.f32 %v1665, %v1666
        %v1683 = vsub.f32 %v1215, %v1667
        %v1684 = vsub.f32 %v1216, %v1668
        %v1685 = vsub.f32 %v1217, %v1669
        %v1686 = vsub.f32 %v1218, %v1670
        %v1687 = vsub.f32 %v1219, %v1671
        %v1688 = vsub.f32 %v1220, %v1672
        %v1689 = vsub.f32 %v1221, %v1673
        %v1690 = vsub.f32 %v1222, %v1674
        %v1691 = vsub.f32 %v1223, %v1675
        %v1692 = vsub.f32 %v1224, %v1676
        %v1693 = vsub.f32 %v1225, %v1677
        %v1694 = vsub.f32 %v1226, %v1678
        %v1695 = vsub.f32 %v1227, %v1679
        %v1696 = vsub.f32 %v1228, %v1680
        %v1697 = vsub.f32 %v1229, %v1681
        %v1698 = vsub.f32 %v1230, %v1682
        %v1699 = vmul.f32 %v1683, %v1683
        %v1700 = vmul.f32 %v1684, %v1684
        %v1701 = vmul.f32 %v1685, %v1685
        %v1702 = vmul.f32 %v1686, %v1686
        %v1703 = vmul.f32 %v1687, %v1687
        %v1704 = vmul.f32 %v1688, %v1688
        %v1705 = vmul.f32 %v1689, %v1689
        %v1706 = vmul.f32 %v1690, %v1690
        %v1707 = vmul.f32 %v1691, %v1691
        %v1708 = vmul.f32 %v1692, %v1692
        %v1709 = vmul.f32 %v1693, %v1693
        %v1710 = vmul.f32 %v1694, %v1694
        %v1711 = vmul.f32 %v1695, %v1695
        %v1712 = vmul.f32 %v1696, %v1696
        %v1713 = vmul.f32 %v1697, %v1697
        %v1714 = vmul.f32 %v1698, %v1698
        %1715 = vadd.xlane.f32.xlu0 %v1699
        %v1716 = vpop.xlane.xlu0 %1715
        %1717 = vadd.xlane.f32.xlu0 %v1700
        %v1718 = vpop.xlane.xlu0 %1717
        %1719 = vadd.xlane.f32.xlu0 %v1701
        %v1720 = vpop.xlane.xlu0 %1719
        %1721 = vadd.xlane.f32.xlu0 %v1702
        %v1722 = vpop.xlane.xlu0 %1721
        %1723 = vadd.xlane.f32.xlu0 %v1703
        %v1724 = vpop.xlane.xlu0 %1723
        %1725 = vadd.xlane.f32.xlu0 %v1704
        %v1726 = vpop.xlane.xlu0 %1725
        %1727 = vadd.xlane.f32.xlu0 %v1705
        %v1728 = vpop.xlane.xlu0 %1727
        %1729 = vadd.xlane.f32.xlu0 %v1706
        %v1730 = vpop.xlane.xlu0 %1729
        %1731 = vadd.xlane.f32.xlu0 %v1707
        %v1732 = vpop.xlane.xlu0 %1731
        %1733 = vadd.xlane.f32.xlu0 %v1708
        %v1734 = vpop.xlane.xlu0 %1733
        %1735 = vadd.xlane.f32.xlu0 %v1709
        %v1736 = vpop.xlane.xlu0 %1735
        %1737 = vadd.xlane.f32.xlu0 %v1710
        %v1738 = vpop.xlane.xlu0 %1737
        %1739 = vadd.xlane.f32.xlu0 %v1711
        %v1740 = vpop.xlane.xlu0 %1739
        %1741 = vadd.xlane.f32.xlu0 %v1712
        %v1742 = vpop.xlane.xlu0 %1741
        %1743 = vadd.xlane.f32.xlu0 %v1713
        %v1744 = vpop.xlane.xlu0 %1743
        %1745 = vadd.xlane.f32.xlu0 %v1714
        %v1746 = vpop.xlane.xlu0 %1745
        %v1747 = vmul.f32 %v1716, %v1666
        %v1748 = vmul.f32 %v1718, %v1666
        %v1749 = vmul.f32 %v1720, %v1666
        %v1750 = vmul.f32 %v1722, %v1666
        %v1751 = vmul.f32 %v1724, %v1666
        %v1752 = vmul.f32 %v1726, %v1666
        %v1753 = vmul.f32 %v1728, %v1666
        %v1754 = vmul.f32 %v1730, %v1666
        %v1755 = vmul.f32 %v1732, %v1666
        %v1756 = vmul.f32 %v1734, %v1666
        %v1757 = vmul.f32 %v1736, %v1666
        %v1758 = vmul.f32 %v1738, %v1666
        %v1759 = vmul.f32 %v1740, %v1666
        %v1760 = vmul.f32 %v1742, %v1666
        %v1761 = vmul.f32 %v1744, %v1666
        %v1762 = vmul.f32 %v1746, %v1666
        %v1763 = vadd.f32 %v1747, 1e-05
        %v1764 = vadd.f32 %v1748, 1e-05
        %v1765 = vadd.f32 %v1749, 1e-05
        %v1766 = vadd.f32 %v1750, 1e-05
        %v1767 = vadd.f32 %v1751, 1e-05
        %v1768 = vadd.f32 %v1752, 1e-05
        %v1769 = vadd.f32 %v1753, 1e-05
        %v1770 = vadd.f32 %v1754, 1e-05
        %v1771 = vadd.f32 %v1755, 1e-05
        %v1772 = vadd.f32 %v1756, 1e-05
        %v1773 = vadd.f32 %v1757, 1e-05
        %v1774 = vadd.f32 %v1758, 1e-05
        %v1775 = vadd.f32 %v1759, 1e-05
        %v1776 = vadd.f32 %v1760, 1e-05
        %v1777 = vadd.f32 %v1761, 1e-05
        %v1778 = vadd.f32 %v1762, 1e-05
        %v1779 = vrsqrt.pop %v1763
        %v1780 = vrsqrt.pop %v1764
        %v1781 = vrsqrt.pop %v1765
        %v1782 = vrsqrt.pop %v1766
        %v1783 = vrsqrt.pop %v1767
        %v1784 = vrsqrt.pop %v1768
        %v1785 = vrsqrt.pop %v1769
        %v1786 = vrsqrt.pop %v1770
        %v1787 = vrsqrt.pop %v1771
        %v1788 = vrsqrt.pop %v1772
        %v1789 = vrsqrt.pop %v1773
        %v1790 = vrsqrt.pop %v1774
        %v1791 = vrsqrt.pop %v1775
        %v1792 = vrsqrt.pop %v1776
        %v1793 = vrsqrt.pop %v1777
        %v1794 = vrsqrt.pop %v1778
        %v1795 = vmul.f32 %v1683, %v1779
        %v1796 = vmul.f32 %v1684, %v1780
        %v1797 = vmul.f32 %v1685, %v1781
        %v1798 = vmul.f32 %v1686, %v1782
        %v1799 = vmul.f32 %v1687, %v1783
        %v1800 = vmul.f32 %v1688, %v1784
        %v1801 = vmul.f32 %v1689, %v1785
        %v1802 = vmul.f32 %v1690, %v1786
        %v1803 = vmul.f32 %v1691, %v1787
        %v1804 = vmul.f32 %v1692, %v1788
        %v1805 = vmul.f32 %v1693, %v1789
        %v1806 = vmul.f32 %v1694, %v1790
        %v1807 = vmul.f32 %v1695, %v1791
        %v1808 = vmul.f32 %v1696, %v1792
        %v1809 = vmul.f32 %v1697, %v1793
        %v1810 = vmul.f32 %v1698, %v1794
        %v1812 = vlaneseq
        %v1813 = vshrl.u32 %v1812, 7
        %v1814 = vsub.s32 0, %v1813
        %v1815 = vrot.slane %v1632, %v1814
        %v1817 = vmul.f32 %v1795, %v1815
        %v1818 = vmul.f32 %v1796, %v1815
        %v1819 = vmul.f32 %v1797, %v1815
        %v1820 = vmul.f32 %v1798, %v1815
        %v1821 = vmul.f32 %v1799, %v1815
        %v1822 = vmul.f32 %v1800, %v1815
        %v1823 = vmul.f32 %v1801, %v1815
        %v1824 = vmul.f32 %v1802, %v1815
        %v1825 = vmul.f32 %v1803, %v1815
        %v1826 = vmul.f32 %v1804, %v1815
        %v1827 = vmul.f32 %v1805, %v1815
        %v1828 = vmul.f32 %v1806, %v1815
        %v1829 = vmul.f32 %v1807, %v1815
        %v1830 = vmul.f32 %v1808, %v1815
        %v1831 = vmul.f32 %v1809, %v1815
        %v1832 = vmul.f32 %v1810, %v1815
        %v1834 = vlaneseq
        %v1835 = vshrl.u32 %v1834, 7
        %v1836 = vsub.s32 0, %v1835
        %v1837 = vrot.slane %v1633, %v1836
        %v1839 = vadd.f32 %v1817, %v1837
        %v1840 = vadd.f32 %v1818, %v1837
        %v1841 = vadd.f32 %v1819, %v1837
        %v1842 = vadd.f32 %v1820, %v1837
        %v1843 = vadd.f32 %v1821, %v1837
        %v1844 = vadd.f32 %v1822, %v1837
        %v1845 = vadd.f32 %v1823, %v1837
        %v1846 = vadd.f32 %v1824, %v1837
        %v1847 = vadd.f32 %v1825, %v1837
        %v1848 = vadd.f32 %v1826, %v1837
        %v1849 = vadd.f32 %v1827, %v1837
        %v1850 = vadd.f32 %v1828, %v1837
        %v1851 = vadd.f32 %v1829, %v1837
        %v1852 = vadd.f32 %v1830, %v1837
        %v1853 = vadd.f32 %v1831, %v1837
        %v1854 = vadd.f32 %v1832, %v1837
        %v1855 = vxor.u32 %v1839, 2147483648
        %v1856 = vxor.u32 %v1840, 2147483648
        %v1857 = vxor.u32 %v1841, 2147483648
        %v1858 = vxor.u32 %v1842, 2147483648
        %v1859 = vxor.u32 %v1843, 2147483648
        %v1860 = vxor.u32 %v1844, 2147483648
        %v1861 = vxor.u32 %v1845, 2147483648
        %v1862 = vxor.u32 %v1846, 2147483648
        %v1863 = vxor.u32 %v1847, 2147483648
        %v1864 = vxor.u32 %v1848, 2147483648
        %v1865 = vxor.u32 %v1849, 2147483648
        %v1866 = vxor.u32 %v1850, 2147483648
        %v1867 = vxor.u32 %v1851, 2147483648
        %v1868 = vxor.u32 %v1852, 2147483648
        %v1869 = vxor.u32 %v1853, 2147483648
        %v1870 = vxor.u32 %v1854, 2147483648
        %v1871 = vmul.f32 %v1855, 1.442695
        %v1872 = vpow.pop %v1871
        %v1873 = vmul.f32 %v1856, 1.442695
        %v1874 = vpow.pop %v1873
        %v1875 = vmul.f32 %v1857, 1.442695
        %v1876 = vpow.pop %v1875
        %v1877 = vmul.f32 %v1858, 1.442695
        %v1878 = vpow.pop %v1877
        %v1879 = vmul.f32 %v1859, 1.442695
        %v1880 = vpow.pop %v1879
        %v1881 = vmul.f32 %v1860, 1.442695
        %v1882 = vpow.pop %v1881
        %v1883 = vmul.f32 %v1861, 1.442695
        %v1884 = vpow.pop %v1883
        %v1885 = vmul.f32 %v1862, 1.442695
        %v1886 = vpow.pop %v1885
        %v1887 = vmul.f32 %v1863, 1.442695
        %v1888 = vpow.pop %v1887
        %v1889 = vmul.f32 %v1864, 1.442695
        %v1890 = vpow.pop %v1889
        %v1891 = vmul.f32 %v1865, 1.442695
        %v1892 = vpow.pop %v1891
        %v1893 = vmul.f32 %v1866, 1.442695
        %v1894 = vpow.pop %v1893
        %v1895 = vmul.f32 %v1867, 1.442695
        %v1896 = vpow.pop %v1895
        %v1897 = vmul.f32 %v1868, 1.442695
        %v1898 = vpow.pop %v1897
        %v1899 = vmul.f32 %v1869, 1.442695
        %v1900 = vpow.pop %v1899
        %v1901 = vmul.f32 %v1870, 1.442695
        %v1902 = vpow.pop %v1901
        %v1903 = vadd.f32 %v1872, 1.0
        %v1904 = vadd.f32 %v1874, 1.0
        %v1905 = vadd.f32 %v1876, 1.0
        %v1906 = vadd.f32 %v1878, 1.0
        %v1907 = vadd.f32 %v1880, 1.0
        %v1908 = vadd.f32 %v1882, 1.0
        %v1909 = vadd.f32 %v1884, 1.0
        %v1910 = vadd.f32 %v1886, 1.0
        %v1911 = vadd.f32 %v1888, 1.0
        %v1912 = vadd.f32 %v1890, 1.0
        %v1913 = vadd.f32 %v1892, 1.0
        %v1914 = vadd.f32 %v1894, 1.0
        %v1915 = vadd.f32 %v1896, 1.0
        %v1916 = vadd.f32 %v1898, 1.0
        %v1917 = vadd.f32 %v1900, 1.0
        %v1918 = vadd.f32 %v1902, 1.0
        %v1919 = vrcp.pop %v1903
        %v1920 = vmul.f32 1.0, %v1919
        %v1921 = vrcp.pop %v1904
        %v1922 = vmul.f32 1.0, %v1921
        %v1923 = vrcp.pop %v1905
        %v1924 = vmul.f32 1.0, %v1923
        %v1925 = vrcp.pop %v1906
        %v1926 = vmul.f32 1.0, %v1925
        %v1927 = vrcp.pop %v1907
        %v1928 = vmul.f32 1.0, %v1927
        %v1929 = vrcp.pop %v1908
        %v1930 = vmul.f32 1.0, %v1929
        %v1931 = vrcp.pop %v1909
        %v1932 = vmul.f32 1.0, %v1931
        %v1933 = vrcp.pop %v1910
        %v1934 = vmul.f32 1.0, %v1933
        %v1935 = vrcp.pop %v1911
        %v1936 = vmul.f32 1.0, %v1935
        %v1937 = vrcp.pop %v1912
        %v1938 = vmul.f32 1.0, %v1937
        %v1939 = vrcp.pop %v1913
        %v1940 = vmul.f32 1.0, %v1939
        %v1941 = vrcp.pop %v1914
        %v1942 = vmul.f32 1.0, %v1941
        %v1943 = vrcp.pop %v1915
        %v1944 = vmul.f32 1.0, %v1943
        %v1945 = vrcp.pop %v1916
        %v1946 = vmul.f32 1.0, %v1945
        %v1947 = vrcp.pop %v1917
        %v1948 = vmul.f32 1.0, %v1947
        %v1949 = vrcp.pop %v1918
        %v1950 = vmul.f32 1.0, %v1949
        %v1951 = vmul.f32 %v1839, %v1920
        %v1952 = vmul.f32 %v1840, %v1922
        %v1953 = vmul.f32 %v1841, %v1924
        %v1954 = vmul.f32 %v1842, %v1926
        %v1955 = vmul.f32 %v1843, %v1928
        %v1956 = vmul.f32 %v1844, %v1930
        %v1957 = vmul.f32 %v1845, %v1932
        %v1958 = vmul.f32 %v1846, %v1934
        %v1959 = vmul.f32 %v1847, %v1936
        %v1960 = vmul.f32 %v1848, %v1938
        %v1961 = vmul.f32 %v1849, %v1940
        %v1962 = vmul.f32 %v1850, %v1942
        %v1963 = vmul.f32 %v1851, %v1944
        %v1964 = vmul.f32 %v1852, %v1946
        %v1965 = vmul.f32 %v1853, %v1948
        %v1966 = vmul.f32 %v1854, %v1950
        %v1967 = vadd.f32 %v645, %v1951
        %v1968 = vadd.f32 %v646, %v1952
        %v1969 = vadd.f32 %v647, %v1953
        %v1970 = vadd.f32 %v648, %v1954
        %v1971 = vadd.f32 %v649, %v1955
        %v1972 = vadd.f32 %v650, %v1956
        %v1973 = vadd.f32 %v651, %v1957
        %v1974 = vadd.f32 %v652, %v1958
        %v1975 = vadd.f32 %v653, %v1959
        %v1976 = vadd.f32 %v654, %v1960
        %v1977 = vadd.f32 %v655, %v1961
        %v1978 = vadd.f32 %v656, %v1962
        %v1979 = vadd.f32 %v657, %v1963
        %v1980 = vadd.f32 %v658, %v1964
        %v1981 = vadd.f32 %v659, %v1965
        %v1982 = vadd.f32 %v660, %v1966
        %1983 = vst [vmem:[%s380] sm:$0xff] %v1967
        %1984 = vst [vmem:[%s380 + $0x8] sm:$0xff] %v1968
        %1985 = vst [vmem:[%s380 + $0x10] sm:$0xff] %v1969
        %1986 = vst [vmem:[%s380 + $0x18] sm:$0xff] %v1970
        %1987 = vst [vmem:[%s380 + $0x20] sm:$0xff] %v1971
        %1988 = vst [vmem:[%s380 + $0x28] sm:$0xff] %v1972
        %1989 = vst [vmem:[%s380 + $0x30] sm:$0xff] %v1973
        %1990 = vst [vmem:[%s380 + $0x38] sm:$0xff] %v1974
        %1991 = vst [vmem:[%s380 + $0x40] sm:$0xff] %v1975
        %1992 = vst [vmem:[%s380 + $0x48] sm:$0xff] %v1976
        %1993 = vst [vmem:[%s380 + $0x50] sm:$0xff] %v1977
        %1994 = vst [vmem:[%s380 + $0x58] sm:$0xff] %v1978
        %1995 = vst [vmem:[%s380 + $0x60] sm:$0xff] %v1979
        %1996 = vst [vmem:[%s380 + $0x68] sm:$0xff] %v1980
        %1997 = vst [vmem:[%s380 + $0x70] sm:$0xff] %v1981
        %1998 = vst [vmem:[%s380 + $0x78] sm:$0xff] %v1982
        %s1999 = sand.u32 %s209, 1
        %s2000 = scalar_lea.sflag [#allocation4], %s1999
        %s2001 = sand.u32 %s209, 1
        %s2002 = smul.addr %s2001, 256
        %s2003 = scalar_lea.vmem [#allocation7], %s2002
        %s2004 = sand.u32 %s237, 1
        %s2005 = scalar_lea.sflag [#allocation9], %s2004
        %s2006 = sand.u32 %s237, 1
        %s2007 = smul.addr %s2006, 128
        %s2008 = scalar_lea.vmem [#allocation8], %s2007
        // Predicated region
        $region61: #{tpu_custom_call.1} parent=47 // pred_check
          %p2009 = pneg %p219
        $region62: #{tpu_custom_call.1} parent=47 // pred_check_branch
          %2011 = sbr.rel (%p2009) target = $region64
        $region63: #{tpu_custom_call.1} parent=47 // pred_region
          %s2013 = ssub.s32 4096, 4096
          %2014 = vsyncadd %s2000, %s2013
          %s2015 = smul.addr %s32, 32
          %s2016 = smul.addr %s2015, 128
          %s2017 = scalar_lea.hbm %s7, %s2016
          %s2018 = sshll.u32 %s2003, 4
          %s2019 = int_to_ptr.vmem [resolvable:$true] %s2018
          %2024 = dma.vmem_to_hbm [thread:$0]  %s2019, 4096, %s2017, %s2000, 256, 256, 16
        $region64: #{tpu_custom_call.1} parent=47 // pred_fallthru
          _
        // Predicated region
        $region65: #{tpu_custom_call.1} parent=47 // pred_check
          %p2025 = pneg %p247
        $region66: #{tpu_custom_call.1} parent=47 // pred_check_branch
          %2027 = sbr.rel (%p2025) target = $region68
        $region67: #{tpu_custom_call.1} parent=47 // pred_region
          %s2028 = sadd.s32 %s32, %s33
          %s2029 = smul.u32 16, %s2028
          %s2031 = ssub.s32 2048, 2048
          %2032 = vsyncadd %s2005, %s2031
          %s2033 = smul.addr %s2029, 128
          %s2034 = scalar_lea.hbm %s8, %s2033
          %s2035 = sshll.u32 %s2008, 4
          %s2036 = int_to_ptr.vmem [resolvable:$true] %s2035
          %2041 = dma.vmem_to_hbm [thread:$0]  %s2036, 2048, %s2034, %s2005, 128, 128, 8
        $region68: #{tpu_custom_call.1} parent=47 // pred_fallthru
          _
      $region48: #{tpu_custom_call.1} parent=5 // pred_fallthru
        _
      %p2042 = scmp.le.s32.totalorder 2, %s23
      // Predicated region
      $region69: #{tpu_custom_call.1} parent=5 // pred_check
        %p2043 = pneg %p2042
      $region70: #{tpu_custom_call.1} parent=5 // pred_check_branch
        %2045 = sbr.rel (%p2043) target = $region72
      $region71: #{tpu_custom_call.1} parent=5 // pred_region
        %s2046 = ssub.s32 %s23, 2
        // Predicated region
        $region73: #{tpu_custom_call.1} parent=71 // pred_check
          %p2047 = pneg %p225
        $region74: #{tpu_custom_call.1} parent=71 // pred_check_branch
          %2049 = sbr.rel (%p2047) target = $region76
        $region75: #{tpu_custom_call.1} parent=71 // pred_region
          %s2050 = sand.u32 %s210, 1
          %s2051 = scalar_lea.sflag [#allocation4], %s2050
          %s2052 = sand.u32 %s210, 1
          %s2053 = smul.addr %s2052, 256
          %s2054 = scalar_lea.vmem [#allocation7], %s2053
          %2055 = dma.done %s2051, 4096
        $region76: #{tpu_custom_call.1} parent=71 // pred_fallthru
          _
        // Predicated region
        $region77: #{tpu_custom_call.1} parent=71 // pred_check
          %p2056 = pneg %p253
        $region78: #{tpu_custom_call.1} parent=71 // pred_check_branch
          %2058 = sbr.rel (%p2056) target = $region80
        $region79: #{tpu_custom_call.1} parent=71 // pred_region
          %s2059 = sand.u32 %s238, 1
          %s2060 = scalar_lea.sflag [#allocation9], %s2059
          %s2061 = sand.u32 %s238, 1
          %s2062 = smul.addr %s2061, 128
          %s2063 = scalar_lea.vmem [#allocation8], %s2062
          %2064 = dma.done %s2060, 2048
        $region80: #{tpu_custom_call.1} parent=71 // pred_fallthru
          _
      $region72: #{tpu_custom_call.1} parent=5 // pred_fallthru
        _
    $region6: #{tpu_custom_call.1} parent=1 // loop_footer
      %s27 = sadd.s32 1, %s23
    $region7: #{tpu_custom_call.1} parent=1 // loop_footer_branch
      %22 = sbr.rel target = $region3
    $region8: #{tpu_custom_call.1} parent=1 // loop_exit
      _
    %2065 = vsyncpa [#allocation3], 1
    %s2066 = scalar_lea.sflag [#allocation3], 1
    %2067 = vsyncpa %s2066, 1
    %2068 = vsyncpa [#allocation6], 1
    %2069 = vsyncpa [#allocation4], 1
    %s2070 = scalar_lea.sflag [#allocation4], 1
    %2071 = vsyncpa %s2070, 1
    %2072 = vsyncpa [#allocation9], 1
    %s2073 = scalar_lea.sflag [#allocation9], 1
    %2074 = vsyncpa %s2073, 1

</llo_original>
